<compile_context>
chip_gen: v7x
topology: tpu7x:2x2x1
jax: 0.10.0
libtpu: 0.0.40
codegen_flags: <defaults>
</compile_context>

<pallas_src>
import functools

import jax
import jax.numpy as jnp
from jax import lax
from jax.experimental import pallas as pl
from jax.experimental.pallas import tpu as pltpu


def _lstm_fc_kernel(x_ref, w_ih_ref, w_hh_ref, b_ref, w_fc_ref, b_fc_ref,
                    out_ref, xp_ref, hh_ref, *, hidden, gate_width, seq_len,
                    batch_pad):
    """Batched input projection -> unrolled LSTM recurrence -> batched FC.

    x_ref:     (T*Bp, DP)  bf16, time-major flattened input (row t*Bp + b)
    w_ih_ref:  (DP, GW)    bf16
    w_hh_ref:  (GW, GW)    bf16  (rows >= H are zero)
    b_ref:     (1, GW)     f32   fused b_ih + b_hh
    w_fc_ref:  (GW, OP)    bf16  (rows >= H are zero)
    b_fc_ref:  (1, OP)     f32
    out_ref:   (T*Bp, OP)  f32, time-major, lane-dense
    xp_ref:    VMEM scratch (T*Bp, GW) f32  precomputed x @ W_ih + b
    hh_ref:    VMEM scratch (T*Bp, GW) f32  hidden-state history
    """
    H, GW, T, Bp = hidden, gate_width, seq_len, batch_pad

    # ---- (1) input projection for ALL timesteps: one bf16 MXU matmul ----------
    xp_ref[...] = (jnp.dot(x_ref[...], w_ih_ref[...],
                           preferred_element_type=jnp.float32)
                   + b_ref[...])                                  # (T*Bp, GW) f32

    # lane-index mask selecting the tanh gate block g (PyTorch gate order i,f,g,o)
    lane = lax.broadcasted_iota(jnp.int32, (Bp, GW), 1)
    g_mask = (lane >= 2 * H) & (lane < 3 * H)

    def roll_lanes(v, shift):
        s = shift % GW
        return v if s == 0 else pltpu.roll(v, shift=s, axis=1)

    # ---- (2) sequential recurrence (static unroll; live state is 2 vregs) ------
    # Real state lives in lanes [0, H); lanes [H, GW) carry bounded junk that is
    # annihilated by the zero-padded rows of w_hh / w_fc, so it never leaks.
    h = jnp.zeros((Bp, GW), jnp.float32)
    c = jnp.zeros((Bp, GW), jnp.float32)
    for t in range(T):
        row = t * Bp                       # static offset, multiple of 8 sublanes
        w_hh = w_hh_ref[...]               # re-read per step: bf16, 8 vregs only
        gates = (xp_ref[pl.ds(row, Bp), :]
                 + jnp.dot(h.astype(jnp.bfloat16), w_hh,
                           preferred_element_type=jnp.float32))   # (Bp, GW) f32

        # one sigmoid pass + one tanh pass over the whole gate vreg
        act = jnp.where(g_mask, jnp.tanh(gates), jax.nn.sigmoid(gates))
        i_act = act                                   # i already at lanes [0, H)
        f_act = roll_lanes(act, GW - H)               # f -> lanes [0, H)
        g_act = roll_lanes(act, GW - 2 * H)           # g -> lanes [0, H)
        o_act = roll_lanes(act, GW - 3 * H)           # o -> lanes [0, H)

        c = f_act * c + i_act * g_act
        h = o_act * jnp.tanh(c)
        hh_ref[pl.ds(row, Bp), :] = h                 # full aligned (8,128) store

    # ---- (3) output Linear for ALL timesteps: one bf16 MXU matmul --------------
    hh = hh_ref[...].astype(jnp.bfloat16)
    out_ref[...] = (jnp.dot(hh, w_fc_ref[...], preferred_element_type=jnp.float32)
                    + b_fc_ref[...]).astype(out_ref.dtype)


def _round_up(n, m):
    return ((n + m - 1) // m) * m


def synth_lstm_forward(x, params):
    """x: (B, T, D_in) float32.  Returns (B, T, output_size)."""
    B, T, D_in = x.shape
    w_ih, w_hh, b_ih, b_hh, w_fc, b_fc = (
        params["w_ih"], params["w_hh"], params["b_ih"],
        params["b_hh"], params["w_fc"], params["b_fc"],
    )
    H = w_hh.shape[0]
    O = w_fc.shape[1]

    GW = _round_up(4 * H, 128)       # lane width of the fused gate axis (128 here)
    DP = _round_up(D_in, 128)        # lane-padded input feature width
    OP = _round_up(O, 128)           # lane-dense output width
    Bp = _round_up(max(B, 8), 8)     # batch padded to a full f32 sublane tile

    f32, bf16 = jnp.float32, jnp.bfloat16

    # Padded / transposed / bf16 weights (zero padding keeps junk lanes dead).
    w_ih_p = jnp.pad(w_ih, ((0, DP - D_in), (0, GW - 4 * H))).astype(bf16)   # (DP, GW)
    w_hh_p = jnp.pad(w_hh, ((0, GW - H), (0, GW - 4 * H))).astype(bf16)      # (GW, GW)
    b_p = jnp.pad((b_ih + b_hh).reshape(1, 4 * H),
                  ((0, 0), (0, GW - 4 * H))).astype(f32)                     # (1, GW)
    w_fc_p = jnp.pad(w_fc, ((0, GW - H), (0, OP - O))).astype(bf16)          # (GW, OP)
    b_fc_p = jnp.pad(b_fc.reshape(1, O), ((0, 0), (0, OP - O))).astype(f32)  # (1, OP)

    # x: (B, T, Din) -> batch/feature padded, time-major, flattened, bf16.
    x_p = jnp.pad(x, ((0, Bp - B), (0, 0), (0, DP - D_in)))
    x2d = jnp.swapaxes(x_p, 0, 1).reshape(T * Bp, DP).astype(bf16)

    kernel = functools.partial(_lstm_fc_kernel, hidden=H, gate_width=GW,
                               seq_len=T, batch_pad=Bp)
    vmem = pl.BlockSpec(memory_space=pltpu.MemorySpace.VMEM)

    cost = pl.CostEstimate(
        flops=2 * T * Bp * (DP * GW + GW * GW + GW * OP),
        transcendentals=3 * T * Bp * GW,
        bytes_accessed=2 * (T * Bp * DP + DP * GW + GW * GW + GW * OP)
                       + 4 * (GW + OP + T * Bp * OP),
    )

    out2d = pl.pallas_call(
        kernel,
        out_shape=jax.ShapeDtypeStruct((T * Bp, OP), x.dtype),
        in_specs=[vmem] * 6,
        out_specs=vmem,
        scratch_shapes=[pltpu.VMEM((T * Bp, GW), jnp.float32),   # x projection
                        pltpu.VMEM((T * Bp, GW), jnp.float32)],  # hidden history
        cost_estimate=cost,
    )(x2d, w_ih_p, w_hh_p, b_p, w_fc_p, b_fc_p)

    # TODO(synk): when B / T grow, add a batch grid axis with
    # dimension_semantics=("parallel",) (v7x 2-TC sharding) and tile the time axis
    # instead of growing the flat (T*Bp, GW) scratches / raising the VMEM limit.

    # (T*Bp, OP) time-major padded -> (B, T, O) batch-first (PyTorch batch_first).
    return jnp.swapaxes(out2d.reshape(T, Bp, OP)[:, :B, :O], 0, 1)


def init_params(key, input_size, hidden_size, output_size):
    """Deterministic init matching PyTorch shapes (stored transposed for the kernel)."""
    ks = jax.random.split(key, 6)
    k = 1.0 / jnp.sqrt(hidden_size)
    u = lambda kk, shape: jax.random.uniform(kk, shape, jnp.float32, -k, k)
    return {
        "w_ih": u(ks[0], (input_size, 4 * hidden_size)),   # PyTorch weight_ih_l0.T
        "w_hh": u(ks[1], (hidden_size, 4 * hidden_size)),  # PyTorch weight_hh_l0.T
        "b_ih": u(ks[2], (4 * hidden_size,)),
        "b_hh": u(ks[3], (4 * hidden_size,)),
        "w_fc": u(ks[4], (hidden_size, output_size)),      # PyTorch fc.weight.T
        "b_fc": u(ks[5], (output_size,)),
    }


def synth_lstm_reference(x, params):
    """Pure-JAX f32 reference of the PyTorch forward (for correctness check)."""
    w_ih, w_hh = params["w_ih"], params["w_hh"]
    b = params["b_ih"] + params["b_hh"]
    w_fc, b_fc = params["w_fc"], params["b_fc"]
    H = w_hh.shape[0]
    B, T, _ = x.shape

    def step(carry, x_t):
        h, c = carry
        g = x_t @ w_ih + h @ w_hh + b
        i = jax.nn.sigmoid(g[:, 0 * H:1 * H])
        f = jax.nn.sigmoid(g[:, 1 * H:2 * H])
        gg = jnp.tanh(g[:, 2 * H:3 * H])
        o = jax.nn.sigmoid(g[:, 3 * H:4 * H])
        c = f * c + i * gg
        h = o * jnp.tanh(c)
        return (h, c), h

    h0 = jnp.zeros((B, H), jnp.float32)
    c0 = jnp.zeros((B, H), jnp.float32)
    _, hs = lax.scan(step, (h0, c0), jnp.swapaxes(x, 0, 1))  # (T, B, H)
    lstm_out = jnp.swapaxes(hs, 0, 1)                        # (B, T, H)
    return lstm_out @ w_fc + b_fc


if __name__ == "__main__":
    # Small shapes consistent with the module: batch=2, seq=8, input=16, hidden=32, out=8.
    B, T, D_IN, H, O = 2, 8, 16, 32, 8

    root = jax.random.PRNGKey(0)
    k_x, k_p = jax.random.split(root)
    x = jax.random.normal(k_x, (B, T, D_IN), jnp.float32)
    params = init_params(k_p, D_IN, H, O)

    out = jax.block_until_ready(synth_lstm_forward(x, params))
    ref = synth_lstm_reference(x, params)

    assert out.shape == (B, T, O)
    # bf16 MXU operands (f32 accumulation) vs the pure-f32 reference -> looser tol.
    assert jnp.allclose(out, ref, atol=3e-2, rtol=3e-2), "Pallas output mismatch vs reference"

    print("KERNEL_OK")
</pallas_src>

<mosaic_0001>
module attributes {stable_mosaic.version = 11 : i64} {
  func.func @_lstm_fc_kernel(%arg0: memref<64x128xbf16, #tpu.memory_space<vmem>>, %arg1: memref<128x128xbf16, #tpu.memory_space<vmem>>, %arg2: memref<128x128xbf16, #tpu.memory_space<vmem>>, %arg3: memref<1x128xf32, #tpu.memory_space<vmem>>, %arg4: memref<128x128xbf16, #tpu.memory_space<vmem>>, %arg5: memref<1x128xf32, #tpu.memory_space<vmem>>, %arg6: memref<64x128xf32, #tpu.memory_space<vmem>>, %arg7: memref<64x128xf32, #tpu.memory_space<vmem>>, %arg8: memref<64x128xf32, #tpu.memory_space<vmem>>) attributes {dimension_semantics = [], scalar_prefetch = 0 : i64, scratch_operands = 2 : i64, tpu.core_type = #tpu.core_type<tc>} {
    %c0 = arith.constant 0 : index
    %c0_0 = arith.constant 0 : index
    %0 = vector.load %arg0[%c0, %c0_0] : memref<64x128xbf16, #tpu.memory_space<vmem>>, vector<64x128xbf16>
    %c0_1 = arith.constant 0 : index
    %c0_2 = arith.constant 0 : index
    %1 = vector.load %arg1[%c0_1, %c0_2] : memref<128x128xbf16, #tpu.memory_space<vmem>>, vector<128x128xbf16>
    %cst = arith.constant dense<0.000000e+00> : vector<64x128xf32>
    %2 = tpu.matmul %0, %1, %cst {dimension_numbers = #tpu.dot_dimension_numbers<[1], [0], [0], [1], [0, 0, 1, 1], [], []>} : vector<64x128xbf16>, vector<128x128xbf16>, vector<64x128xf32> -> vector<64x128xf32>
    %c0_3 = arith.constant 0 : index
    %c0_4 = arith.constant 0 : index
    %3 = vector.load %arg3[%c0_3, %c0_4] : memref<1x128xf32, #tpu.memory_space<vmem>>, vector<1x128xf32>
    %4 = vector.broadcast %3 : vector<1x128xf32> to vector<64x128xf32>
    %5 = arith.addf %2, %4 : vector<64x128xf32>
    %c0_5 = arith.constant 0 : index
    %c0_6 = arith.constant 0 : index
    %6 = vector.load %arg7[%c0_5, %c0_6] : memref<64x128xf32, #tpu.memory_space<vmem>>, vector<64x128xf32>
    tpu.vector_store %arg7[%c0_5, %c0_6], %5 {strides = array<i32>} : memref<64x128xf32, #tpu.memory_space<vmem>>, vector<64x128xf32>,
    %7 = tpu.iota {dimensions = array<i32: 1>} : vector<8x128xi32>
    %c64_i32 = arith.constant 64 : i32
    %8 = vector.broadcast %c64_i32 : i32 to vector<8x128xi32>
    %9 = arith.cmpi sge, %7, %8 : vector<8x128xi32>
    %c96_i32 = arith.constant 96 : i32
    %10 = vector.broadcast %c96_i32 : i32 to vector<8x128xi32>
    %11 = arith.cmpi slt, %7, %10 : vector<8x128xi32>
    %12 = arith.andi %9, %11 : vector<8x128xi1>
    %cst_7 = arith.constant 0.000000e+00 : f32
    %13 = vector.broadcast %cst_7 : f32 to vector<8x128xf32>
    %cst_8 = arith.constant 0.000000e+00 : f32
    %14 = vector.broadcast %cst_8 : f32 to vector<8x128xf32>
    %c0_9 = arith.constant 0 : index
    %c0_10 = arith.constant 0 : index
    %15 = vector.load %arg2[%c0_9, %c0_10] : memref<128x128xbf16, #tpu.memory_space<vmem>>, vector<128x128xbf16>
    %c0_11 = arith.constant 0 : index
    %c0_12 = arith.constant 0 : index
    %16 = vector.load %arg7[%c0_11, %c0_12] : memref<64x128xf32, #tpu.memory_space<vmem>>, vector<8x128xf32>
    %17 = arith.truncf %13 : vector<8x128xf32> to vector<8x128xbf16>
    %cst_13 = arith.constant dense<0.000000e+00> : vector<8x128xf32>
    %18 = tpu.matmul %17, %15, %cst_13 {dimension_numbers = #tpu.dot_dimension_numbers<[1], [0], [0], [1], [0, 0, 1, 1], [], []>} : vector<8x128xbf16>, vector<128x128xbf16>, vector<8x128xf32> -> vector<8x128xf32>
    %19 = arith.addf %16, %18 : vector<8x128xf32>
    %20 = math.tanh %19 : vector<8x128xf32>
    %21 = arith.negf %19 : vector<8x128xf32>
    %22 = math.exp %21 : vector<8x128xf32>
    %cst_14 = arith.constant 1.000000e+00 : f32
    %23 = vector.broadcast %cst_14 : f32 to vector<8x128xf32>
    %24 = arith.addf %23, %22 : vector<8x128xf32>
    %25 = arith.divf %23, %24 : vector<8x128xf32>
    %26 = arith.select %12, %20, %25 : vector<8x128xi1>, vector<8x128xf32>
    %c96_i32_15 = arith.constant 96 : i32
    %27 = tpu.dynamic_rotate %26 by %c96_i32_15 dim 1 : vector<8x128xf32>, i32 -> vector<8x128xf32>
    %c64_i32_16 = arith.constant 64 : i32
    %28 = tpu.dynamic_rotate %26 by %c64_i32_16 dim 1 : vector<8x128xf32>, i32 -> vector<8x128xf32>
    %c32_i32 = arith.constant 32 : i32
    %29 = tpu.dynamic_rotate %26 by %c32_i32 dim 1 : vector<8x128xf32>, i32 -> vector<8x128xf32>
    %30 = arith.mulf %27, %14 : vector<8x128xf32>
    %31 = arith.mulf %26, %28 : vector<8x128xf32>
    %32 = arith.addf %30, %31 : vector<8x128xf32>
    %33 = math.tanh %32 : vector<8x128xf32>
    %34 = arith.mulf %29, %33 : vector<8x128xf32>
    %c0_17 = arith.constant 0 : index
    %c0_18 = arith.constant 0 : index
    %35 = vector.load %arg8[%c0_17, %c0_18] : memref<64x128xf32, #tpu.memory_space<vmem>>, vector<8x128xf32>
    tpu.vector_store %arg8[%c0_17, %c0_18], %34 {strides = array<i32>} : memref<64x128xf32, #tpu.memory_space<vmem>>, vector<8x128xf32>,
    %c0_19 = arith.constant 0 : index
    %c0_20 = arith.constant 0 : index
    %36 = vector.load %arg2[%c0_19, %c0_20] : memref<128x128xbf16, #tpu.memory_space<vmem>>, vector<128x128xbf16>
    %c8 = arith.constant 8 : index
    %c0_21 = arith.constant 0 : index
    %37 = vector.load %arg7[%c8, %c0_21] : memref<64x128xf32, #tpu.memory_space<vmem>>, vector<8x128xf32>
    %38 = arith.truncf %34 : vector<8x128xf32> to vector<8x128xbf16>
    %cst_22 = arith.constant dense<0.000000e+00> : vector<8x128xf32>
    %39 = tpu.matmul %38, %36, %cst_22 {dimension_numbers = #tpu.dot_dimension_numbers<[1], [0], [0], [1], [0, 0, 1, 1], [], []>} : vector<8x128xbf16>, vector<128x128xbf16>, vector<8x128xf32> -> vector<8x128xf32>
    %40 = arith.addf %37, %39 : vector<8x128xf32>
    %41 = math.tanh %40 : vector<8x128xf32>
    %42 = arith.negf %40 : vector<8x128xf32>
    %43 = math.exp %42 : vector<8x128xf32>
    %cst_23 = arith.constant 1.000000e+00 : f32
    %44 = vector.broadcast %cst_23 : f32 to vector<8x128xf32>
    %45 = arith.addf %44, %43 : vector<8x128xf32>
    %46 = arith.divf %44, %45 : vector<8x128xf32>
    %47 = arith.select %12, %41, %46 : vector<8x128xi1>, vector<8x128xf32>
    %c96_i32_24 = arith.constant 96 : i32
    %48 = tpu.dynamic_rotate %47 by %c96_i32_24 dim 1 : vector<8x128xf32>, i32 -> vector<8x128xf32>
    %c64_i32_25 = arith.constant 64 : i32
    %49 = tpu.dynamic_rotate %47 by %c64_i32_25 dim 1 : vector<8x128xf32>, i32 -> vector<8x128xf32>
    %c32_i32_26 = arith.constant 32 : i32
    %50 = tpu.dynamic_rotate %47 by %c32_i32_26 dim 1 : vector<8x128xf32>, i32 -> vector<8x128xf32>
    %51 = arith.mulf %48, %32 : vector<8x128xf32>
    %52 = arith.mulf %47, %49 : vector<8x128xf32>
    %53 = arith.addf %51, %52 : vector<8x128xf32>
    %54 = math.tanh %53 : vector<8x128xf32>
    %55 = arith.mulf %50, %54 : vector<8x128xf32>
    %c8_27 = arith.constant 8 : index
    %c0_28 = arith.constant 0 : index
    %56 = vector.load %arg8[%c8_27, %c0_28] : memref<64x128xf32, #tpu.memory_space<vmem>>, vector<8x128xf32>
    tpu.vector_store %arg8[%c8_27, %c0_28], %55 {strides = array<i32>} : memref<64x128xf32, #tpu.memory_space<vmem>>, vector<8x128xf32>,
    %c0_29 = arith.constant 0 : index
    %c0_30 = arith.constant 0 : index
    %57 = vector.load %arg2[%c0_29, %c0_30] : memref<128x128xbf16, #tpu.memory_space<vmem>>, vector<128x128xbf16>
    %c16 = arith.constant 16 : index
    %c0_31 = arith.constant 0 : index
    %58 = vector.load %arg7[%c16, %c0_31] : memref<64x128xf32, #tpu.memory_space<vmem>>, vector<8x128xf32>
    %59 = arith.truncf %55 : vector<8x128xf32> to vector<8x128xbf16>
    %cst_32 = arith.constant dense<0.000000e+00> : vector<8x128xf32>
    %60 = tpu.matmul %59, %57, %cst_32 {dimension_numbers = #tpu.dot_dimension_numbers<[1], [0], [0], [1], [0, 0, 1, 1], [], []>} : vector<8x128xbf16>, vector<128x128xbf16>, vector<8x128xf32> -> vector<8x128xf32>
    %61 = arith.addf %58, %60 : vector<8x128xf32>
    %62 = math.tanh %61 : vector<8x128xf32>
    %63 = arith.negf %61 : vector<8x128xf32>
    %64 = math.exp %63 : vector<8x128xf32>
    %cst_33 = arith.constant 1.000000e+00 : f32
    %65 = vector.broadcast %cst_33 : f32 to vector<8x128xf32>
    %66 = arith.addf %65, %64 : vector<8x128xf32>
    %67 = arith.divf %65, %66 : vector<8x128xf32>
    %68 = arith.select %12, %62, %67 : vector<8x128xi1>, vector<8x128xf32>
    %c96_i32_34 = arith.constant 96 : i32
    %69 = tpu.dynamic_rotate %68 by %c96_i32_34 dim 1 : vector<8x128xf32>, i32 -> vector<8x128xf32>
    %c64_i32_35 = arith.constant 64 : i32
    %70 = tpu.dynamic_rotate %68 by %c64_i32_35 dim 1 : vector<8x128xf32>, i32 -> vector<8x128xf32>
    %c32_i32_36 = arith.constant 32 : i32
    %71 = tpu.dynamic_rotate %68 by %c32_i32_36 dim 1 : vector<8x128xf32>, i32 -> vector<8x128xf32>
    %72 = arith.mulf %69, %53 : vector<8x128xf32>
    %73 = arith.mulf %68, %70 : vector<8x128xf32>
    %74 = arith.addf %72, %73 : vector<8x128xf32>
    %75 = math.tanh %74 : vector<8x128xf32>
    %76 = arith.mulf %71, %75 : vector<8x128xf32>
    %c16_37 = arith.constant 16 : index
    %c0_38 = arith.constant 0 : index
    %77 = vector.load %arg8[%c16_37, %c0_38] : memref<64x128xf32, #tpu.memory_space<vmem>>, vector<8x128xf32>
    tpu.vector_store %arg8[%c16_37, %c0_38], %76 {strides = array<i32>} : memref<64x128xf32, #tpu.memory_space<vmem>>, vector<8x128xf32>,
    %c0_39 = arith.constant 0 : index
    %c0_40 = arith.constant 0 : index
    %78 = vector.load %arg2[%c0_39, %c0_40] : memref<128x128xbf16, #tpu.memory_space<vmem>>, vector<128x128xbf16>
    %c24 = arith.constant 24 : index
    %c0_41 = arith.constant 0 : index
    %79 = vector.load %arg7[%c24, %c0_41] : memref<64x128xf32, #tpu.memory_space<vmem>>, vector<8x128xf32>
    %80 = arith.truncf %76 : vector<8x128xf32> to vector<8x128xbf16>
    %cst_42 = arith.constant dense<0.000000e+00> : vector<8x128xf32>
    %81 = tpu.matmul %80, %78, %cst_42 {dimension_numbers = #tpu.dot_dimension_numbers<[1], [0], [0], [1], [0, 0, 1, 1], [], []>} : vector<8x128xbf16>, vector<128x128xbf16>, vector<8x128xf32> -> vector<8x128xf32>
    %82 = arith.addf %79, %81 : vector<8x128xf32>
    %83 = math.tanh %82 : vector<8x128xf32>
    %84 = arith.negf %82 : vector<8x128xf32>
    %85 = math.exp %84 : vector<8x128xf32>
    %cst_43 = arith.constant 1.000000e+00 : f32
    %86 = vector.broadcast %cst_43 : f32 to vector<8x128xf32>
    %87 = arith.addf %86, %85 : vector<8x128xf32>
    %88 = arith.divf %86, %87 : vector<8x128xf32>
    %89 = arith.select %12, %83, %88 : vector<8x128xi1>, vector<8x128xf32>
    %c96_i32_44 = arith.constant 96 : i32
    %90 = tpu.dynamic_rotate %89 by %c96_i32_44 dim 1 : vector<8x128xf32>, i32 -> vector<8x128xf32>
    %c64_i32_45 = arith.constant 64 : i32
    %91 = tpu.dynamic_rotate %89 by %c64_i32_45 dim 1 : vector<8x128xf32>, i32 -> vector<8x128xf32>
    %c32_i32_46 = arith.constant 32 : i32
    %92 = tpu.dynamic_rotate %89 by %c32_i32_46 dim 1 : vector<8x128xf32>, i32 -> vector<8x128xf32>
    %93 = arith.mulf %90, %74 : vector<8x128xf32>
    %94 = arith.mulf %89, %91 : vector<8x128xf32>
    %95 = arith.addf %93, %94 : vector<8x128xf32>
    %96 = math.tanh %95 : vector<8x128xf32>
    %97 = arith.mulf %92, %96 : vector<8x128xf32>
    %c24_47 = arith.constant 24 : index
    %c0_48 = arith.constant 0 : index
    %98 = vector.load %arg8[%c24_47, %c0_48] : memref<64x128xf32, #tpu.memory_space<vmem>>, vector<8x128xf32>
    tpu.vector_store %arg8[%c24_47, %c0_48], %97 {strides = array<i32>} : memref<64x128xf32, #tpu.memory_space<vmem>>, vector<8x128xf32>,
    %c0_49 = arith.constant 0 : index
    %c0_50 = arith.constant 0 : index
    %99 = vector.load %arg2[%c0_49, %c0_50] : memref<128x128xbf16, #tpu.memory_space<vmem>>, vector<128x128xbf16>
    %c32 = arith.constant 32 : index
    %c0_51 = arith.constant 0 : index
    %100 = vector.load %arg7[%c32, %c0_51] : memref<64x128xf32, #tpu.memory_space<vmem>>, vector<8x128xf32>
    %101 = arith.truncf %97 : vector<8x128xf32> to vector<8x128xbf16>
    %cst_52 = arith.constant dense<0.000000e+00> : vector<8x128xf32>
    %102 = tpu.matmul %101, %99, %cst_52 {dimension_numbers = #tpu.dot_dimension_numbers<[1], [0], [0], [1], [0, 0, 1, 1], [], []>} : vector<8x128xbf16>, vector<128x128xbf16>, vector<8x128xf32> -> vector<8x128xf32>
    %103 = arith.addf %100, %102 : vector<8x128xf32>
    %104 = math.tanh %103 : vector<8x128xf32>
    %105 = arith.negf %103 : vector<8x128xf32>
    %106 = math.exp %105 : vector<8x128xf32>
    %cst_53 = arith.constant 1.000000e+00 : f32
    %107 = vector.broadcast %cst_53 : f32 to vector<8x128xf32>
    %108 = arith.addf %107, %106 : vector<8x128xf32>
    %109 = arith.divf %107, %108 : vector<8x128xf32>
    %110 = arith.select %12, %104, %109 : vector<8x128xi1>, vector<8x128xf32>
    %c96_i32_54 = arith.constant 96 : i32
    %111 = tpu.dynamic_rotate %110 by %c96_i32_54 dim 1 : vector<8x128xf32>, i32 -> vector<8x128xf32>
    %c64_i32_55 = arith.constant 64 : i32
    %112 = tpu.dynamic_rotate %110 by %c64_i32_55 dim 1 : vector<8x128xf32>, i32 -> vector<8x128xf32>
    %c32_i32_56 = arith.constant 32 : i32
    %113 = tpu.dynamic_rotate %110 by %c32_i32_56 dim 1 : vector<8x128xf32>, i32 -> vector<8x128xf32>
    %114 = arith.mulf %111, %95 : vector<8x128xf32>
    %115 = arith.mulf %110, %112 : vector<8x128xf32>
    %116 = arith.addf %114, %115 : vector<8x128xf32>
    %117 = math.tanh %116 : vector<8x128xf32>
    %118 = arith.mulf %113, %117 : vector<8x128xf32>
    %c32_57 = arith.constant 32 : index
    %c0_58 = arith.constant 0 : index
    %119 = vector.load %arg8[%c32_57, %c0_58] : memref<64x128xf32, #tpu.memory_space<vmem>>, vector<8x128xf32>
    tpu.vector_store %arg8[%c32_57, %c0_58], %118 {strides = array<i32>} : memref<64x128xf32, #tpu.memory_space<vmem>>, vector<8x128xf32>,
    %c0_59 = arith.constant 0 : index
    %c0_60 = arith.constant 0 : index
    %120 = vector.load %arg2[%c0_59, %c0_60] : memref<128x128xbf16, #tpu.memory_space<vmem>>, vector<128x128xbf16>
    %c40 = arith.constant 40 : index
    %c0_61 = arith.constant 0 : index
    %121 = vector.load %arg7[%c40, %c0_61] : memref<64x128xf32, #tpu.memory_space<vmem>>, vector<8x128xf32>
    %122 = arith.truncf %118 : vector<8x128xf32> to vector<8x128xbf16>
    %cst_62 = arith.constant dense<0.000000e+00> : vector<8x128xf32>
    %123 = tpu.matmul %122, %120, %cst_62 {dimension_numbers = #tpu.dot_dimension_numbers<[1], [0], [0], [1], [0, 0, 1, 1], [], []>} : vector<8x128xbf16>, vector<128x128xbf16>, vector<8x128xf32> -> vector<8x128xf32>
    %124 = arith.addf %121, %123 : vector<8x128xf32>
    %125 = math.tanh %124 : vector<8x128xf32>
    %126 = arith.negf %124 : vector<8x128xf32>
    %127 = math.exp %126 : vector<8x128xf32>
    %cst_63 = arith.constant 1.000000e+00 : f32
    %128 = vector.broadcast %cst_63 : f32 to vector<8x128xf32>
    %129 = arith.addf %128, %127 : vector<8x128xf32>
    %130 = arith.divf %128, %129 : vector<8x128xf32>
    %131 = arith.select %12, %125, %130 : vector<8x128xi1>, vector<8x128xf32>
    %c96_i32_64 = arith.constant 96 : i32
    %132 = tpu.dynamic_rotate %131 by %c96_i32_64 dim 1 : vector<8x128xf32>, i32 -> vector<8x128xf32>
    %c64_i32_65 = arith.constant 64 : i32
    %133 = tpu.dynamic_rotate %131 by %c64_i32_65 dim 1 : vector<8x128xf32>, i32 -> vector<8x128xf32>
    %c32_i32_66 = arith.constant 32 : i32
    %134 = tpu.dynamic_rotate %131 by %c32_i32_66 dim 1 : vector<8x128xf32>, i32 -> vector<8x128xf32>
    %135 = arith.mulf %132, %116 : vector<8x128xf32>
    %136 = arith.mulf %131, %133 : vector<8x128xf32>
    %137 = arith.addf %135, %136 : vector<8x128xf32>
    %138 = math.tanh %137 : vector<8x128xf32>
    %139 = arith.mulf %134, %138 : vector<8x128xf32>
    %c40_67 = arith.constant 40 : index
    %c0_68 = arith.constant 0 : index
    %140 = vector.load %arg8[%c40_67, %c0_68] : memref<64x128xf32, #tpu.memory_space<vmem>>, vector<8x128xf32>
    tpu.vector_store %arg8[%c40_67, %c0_68], %139 {strides = array<i32>} : memref<64x128xf32, #tpu.memory_space<vmem>>, vector<8x128xf32>,
    %c0_69 = arith.constant 0 : index
    %c0_70 = arith.constant 0 : index
    %141 = vector.load %arg2[%c0_69, %c0_70] : memref<128x128xbf16, #tpu.memory_space<vmem>>, vector<128x128xbf16>
    %c48 = arith.constant 48 : index
    %c0_71 = arith.constant 0 : index
    %142 = vector.load %arg7[%c48, %c0_71] : memref<64x128xf32, #tpu.memory_space<vmem>>, vector<8x128xf32>
    %143 = arith.truncf %139 : vector<8x128xf32> to vector<8x128xbf16>
    %cst_72 = arith.constant dense<0.000000e+00> : vector<8x128xf32>
    %144 = tpu.matmul %143, %141, %cst_72 {dimension_numbers = #tpu.dot_dimension_numbers<[1], [0], [0], [1], [0, 0, 1, 1], [], []>} : vector<8x128xbf16>, vector<128x128xbf16>, vector<8x128xf32> -> vector<8x128xf32>
    %145 = arith.addf %142, %144 : vector<8x128xf32>
    %146 = math.tanh %145 : vector<8x128xf32>
    %147 = arith.negf %145 : vector<8x128xf32>
    %148 = math.exp %147 : vector<8x128xf32>
    %cst_73 = arith.constant 1.000000e+00 : f32
    %149 = vector.broadcast %cst_73 : f32 to vector<8x128xf32>
    %150 = arith.addf %149, %148 : vector<8x128xf32>
    %151 = arith.divf %149, %150 : vector<8x128xf32>
    %152 = arith.select %12, %146, %151 : vector<8x128xi1>, vector<8x128xf32>
    %c96_i32_74 = arith.constant 96 : i32
    %153 = tpu.dynamic_rotate %152 by %c96_i32_74 dim 1 : vector<8x128xf32>, i32 -> vector<8x128xf32>
    %c64_i32_75 = arith.constant 64 : i32
    %154 = tpu.dynamic_rotate %152 by %c64_i32_75 dim 1 : vector<8x128xf32>, i32 -> vector<8x128xf32>
    %c32_i32_76 = arith.constant 32 : i32
    %155 = tpu.dynamic_rotate %152 by %c32_i32_76 dim 1 : vector<8x128xf32>, i32 -> vector<8x128xf32>
    %156 = arith.mulf %153, %137 : vector<8x128xf32>
    %157 = arith.mulf %152, %154 : vector<8x128xf32>
    %158 = arith.addf %156, %157 : vector<8x128xf32>
    %159 = math.tanh %158 : vector<8x128xf32>
    %160 = arith.mulf %155, %159 : vector<8x128xf32>
    %c48_77 = arith.constant 48 : index
    %c0_78 = arith.constant 0 : index
    %161 = vector.load %arg8[%c48_77, %c0_78] : memref<64x128xf32, #tpu.memory_space<vmem>>, vector<8x128xf32>
    tpu.vector_store %arg8[%c48_77, %c0_78], %160 {strides = array<i32>} : memref<64x128xf32, #tpu.memory_space<vmem>>, vector<8x128xf32>,
    %c0_79 = arith.constant 0 : index
    %c0_80 = arith.constant 0 : index
    %162 = vector.load %arg2[%c0_79, %c0_80] : memref<128x128xbf16, #tpu.memory_space<vmem>>, vector<128x128xbf16>
    %c56 = arith.constant 56 : index
    %c0_81 = arith.constant 0 : index
    %163 = vector.load %arg7[%c56, %c0_81] : memref<64x128xf32, #tpu.memory_space<vmem>>, vector<8x128xf32>
    %164 = arith.truncf %160 : vector<8x128xf32> to vector<8x128xbf16>
    %cst_82 = arith.constant dense<0.000000e+00> : vector<8x128xf32>
    %165 = tpu.matmul %164, %162, %cst_82 {dimension_numbers = #tpu.dot_dimension_numbers<[1], [0], [0], [1], [0, 0, 1, 1], [], []>} : vector<8x128xbf16>, vector<128x128xbf16>, vector<8x128xf32> -> vector<8x128xf32>
    %166 = arith.addf %163, %165 : vector<8x128xf32>
    %167 = math.tanh %166 : vector<8x128xf32>
    %168 = arith.negf %166 : vector<8x128xf32>
    %169 = math.exp %168 : vector<8x128xf32>
    %cst_83 = arith.constant 1.000000e+00 : f32
    %170 = vector.broadcast %cst_83 : f32 to vector<8x128xf32>
    %171 = arith.addf %170, %169 : vector<8x128xf32>
    %172 = arith.divf %170, %171 : vector<8x128xf32>
    %173 = arith.select %12, %167, %172 : vector<8x128xi1>, vector<8x128xf32>
    %c96_i32_84 = arith.constant 96 : i32
    %174 = tpu.dynamic_rotate %173 by %c96_i32_84 dim 1 : vector<8x128xf32>, i32 -> vector<8x128xf32>
    %c64_i32_85 = arith.constant 64 : i32
    %175 = tpu.dynamic_rotate %173 by %c64_i32_85 dim 1 : vector<8x128xf32>, i32 -> vector<8x128xf32>
    %c32_i32_86 = arith.constant 32 : i32
    %176 = tpu.dynamic_rotate %173 by %c32_i32_86 dim 1 : vector<8x128xf32>, i32 -> vector<8x128xf32>
    %177 = arith.mulf %174, %158 : vector<8x128xf32>
    %178 = arith.mulf %173, %175 : vector<8x128xf32>
    %179 = arith.addf %177, %178 : vector<8x128xf32>
    %180 = math.tanh %179 : vector<8x128xf32>
    %181 = arith.mulf %176, %180 : vector<8x128xf32>
    %c56_87 = arith.constant 56 : index
    %c0_88 = arith.constant 0 : index
    %182 = vector.load %arg8[%c56_87, %c0_88] : memref<64x128xf32, #tpu.memory_space<vmem>>, vector<8x128xf32>
    tpu.vector_store %arg8[%c56_87, %c0_88], %181 {strides = array<i32>} : memref<64x128xf32, #tpu.memory_space<vmem>>, vector<8x128xf32>,
    %c0_89 = arith.constant 0 : index
    %c0_90 = arith.constant 0 : index
    %183 = vector.load %arg8[%c0_89, %c0_90] : memref<64x128xf32, #tpu.memory_space<vmem>>, vector<64x128xf32>
    %184 = arith.truncf %183 : vector<64x128xf32> to vector<64x128xbf16>
    %c0_91 = arith.constant 0 : index
    %c0_92 = arith.constant 0 : index
    %185 = vector.load %arg4[%c0_91, %c0_92] : memref<128x128xbf16, #tpu.memory_space<vmem>>, vector<128x128xbf16>
    %cst_93 = arith.constant dense<0.000000e+00> : vector<64x128xf32>
    %186 = tpu.matmul %184, %185, %cst_93 {dimension_numbers = #tpu.dot_dimension_numbers<[1], [0], [0], [1], [0, 0, 1, 1], [], []>} : vector<64x128xbf16>, vector<128x128xbf16>, vector<64x128xf32> -> vector<64x128xf32>
    %c0_94 = arith.constant 0 : index
    %c0_95 = arith.constant 0 : index
    %187 = vector.load %arg5[%c0_94, %c0_95] : memref<1x128xf32, #tpu.memory_space<vmem>>, vector<1x128xf32>
    %188 = vector.broadcast %187 : vector<1x128xf32> to vector<64x128xf32>
    %189 = arith.addf %186, %188 : vector<64x128xf32>
    %c0_96 = arith.constant 0 : index
    %c0_97 = arith.constant 0 : index
    %190 = vector.load %arg6[%c0_96, %c0_97] : memref<64x128xf32, #tpu.memory_space<vmem>>, vector<64x128xf32>
    tpu.vector_store %arg6[%c0_96, %c0_97], %189 {strides = array<i32>} : memref<64x128xf32, #tpu.memory_space<vmem>>, vector<64x128xf32>,
    return
  }
}

</mosaic_0001>

<llo_original>
// kernel: tpu_custom_call.1
$region0: #{tpu_custom_call.1}
  #allocation0 [shape = 'u32[]', space=smem, size = 0x4, offset = 0x4, fixed_abs, tag = 'smem constant byte address 0x4 - core index']
  #allocation1 [shape = 'u32[144,128]{1,0:T(1,128)}', space=vmem, size = 0x12000, scoped, tag = 'internal scratch']
  #allocation2 [shape = 'f32[64,128]{1,0:T(8,128)}', space=vmem, size = 0x8000, scoped, tag = 'scratch operand']
  #allocation3 [shape = 'f32[64,128]{1,0:T(8,128)}', space=vmem, size = 0x8000, scoped, tag = 'scratch operand']
  %s0 = inlined_call_operand.hbm [shape: bf16[64,128], index: 0, kind: input, shape index: {}]
  %s1 = inlined_call_operand.hbm [shape: bf16[128,128], index: 1, kind: input, shape index: {}]
  %s2 = inlined_call_operand.hbm [shape: bf16[128,128], index: 2, kind: input, shape index: {}]
  %s3 = inlined_call_operand.vmem [shape: f32[1,128], index: 3, kind: input, shape index: {}]
  %s4 = inlined_call_operand.hbm [shape: bf16[128,128], index: 4, kind: input, shape index: {}]
  %s5 = inlined_call_operand.vmem [shape: f32[1,128], index: 5, kind: input, shape index: {}]
  %s6 = inlined_call_operand.hbm [shape: f32[64,128], index: 6, kind: output, shape index: {}]
  %s7 = sld [smem:[#allocation0]]
  $region50: #{tpu_custom_call.1} parent=0
    _
  %s9 = ssub.s32 1, %s7
  %s10 = scalar_select 0, %s9, %s7
  $region1: #{tpu_custom_call.1} parent=0
    #allocation4 [shape = 'u8[16384]{0}', space=vmem, size = 0x4000, scoped, tag = 'input window, operand 0, single buffered']
    #allocation5 [shape = 's32[1]{0}', space=sflag, size = 0x4, scoped, tag = 'scoped memory for tpu_custom_call.1']
    #allocation6 [shape = 's32[1]{0}', space=sflag, size = 0x4, scoped, tag = 'scoped memory for tpu_custom_call.1']
    #allocation7 [shape = 'u8[32768]{0}', space=vmem, size = 0x8000, scoped, tag = 'input window, operand 1, single buffered']
    #allocation8 [shape = 's32[1]{0}', space=sflag, size = 0x4, scoped, tag = 'scoped memory for tpu_custom_call.1']
    #allocation9 [shape = 'u8[32768]{0}', space=vmem, size = 0x8000, scoped, tag = 'input window, operand 2, single buffered']
    #allocation10 [shape = 'u8[32768]{0}', space=vmem, size = 0x8000, scoped, tag = 'input window, operand 4, single buffered']
    #allocation11 [shape = 's32[1]{0}', space=sflag, size = 0x4, scoped, tag = 'scoped memory for tpu_custom_call.1']
    #allocation12 [shape = 'u8[32768]{0}', space=vmem, size = 0x8000, scoped, tag = 'output window, operand 0, single buffered']
    %11 = vsyncpa [#allocation5], 0
    %12 = vsyncpa [#allocation8], 0
    %13 = vsyncpa [#allocation11], 0
    %14 = vsyncpa [#allocation6], 0
    // Predicated region
    $region2: #{tpu_custom_call.1} parent=1 // pred_check
      _
    $region3: #{tpu_custom_call.1} parent=1 // pred_check_branch
      %16 = sbr.rel (0) target = $region5
    $region4: #{tpu_custom_call.1} parent=1 // pred_region
      %s18 = ssub.s32 512, 512
      %19 = vsyncadd [#allocation5], %s18
      %s20 = sshll.u32 [#allocation4], 4
      %s21 = int_to_ptr.vmem [resolvable:$true] %s20
      %26 = dma.hbm_to_vmem [thread:$0]  %s0, 512, %s21, [#allocation5], 64, 64, 4
    $region5: #{tpu_custom_call.1} parent=1 // pred_fallthru
      _
    // Predicated region
    $region6: #{tpu_custom_call.1} parent=1 // pred_check
      _
    $region7: #{tpu_custom_call.1} parent=1 // pred_check_branch
      %28 = sbr.rel (0) target = $region9
    $region8: #{tpu_custom_call.1} parent=1 // pred_region
      %s30 = ssub.s32 1024, 1024
      %31 = vsyncadd [#allocation8], %s30
      %s32 = sshll.u32 [#allocation7], 4
      %s33 = int_to_ptr.vmem [resolvable:$true] %s32
      %38 = dma.hbm_to_vmem [thread:$0]  %s1, 1024, %s33, [#allocation8], 64, 64, 4
    $region9: #{tpu_custom_call.1} parent=1 // pred_fallthru
      _
    // Predicated region
    $region10: #{tpu_custom_call.1} parent=1 // pred_check
      _
    $region11: #{tpu_custom_call.1} parent=1 // pred_check_branch
      %40 = sbr.rel (0) target = $region13
    $region12: #{tpu_custom_call.1} parent=1 // pred_region
      %s42 = ssub.s32 1024, 1024
      %43 = vsyncadd [#allocation8], %s42
      %s44 = sshll.u32 [#allocation9], 4
      %s45 = int_to_ptr.vmem [resolvable:$true] %s44
      %50 = dma.hbm_to_vmem [thread:$0]  %s2, 1024, %s45, [#allocation8], 64, 64, 4
    $region13: #{tpu_custom_call.1} parent=1 // pred_fallthru
      _
    // Predicated region
    $region14: #{tpu_custom_call.1} parent=1 // pred_check
      _
    $region15: #{tpu_custom_call.1} parent=1 // pred_check_branch
      %52 = sbr.rel (0) target = $region17
    $region16: #{tpu_custom_call.1} parent=1 // pred_region
      _
    $region17: #{tpu_custom_call.1} parent=1 // pred_fallthru
      _
    // Predicated region
    $region18: #{tpu_custom_call.1} parent=1 // pred_check
      _
    $region19: #{tpu_custom_call.1} parent=1 // pred_check_branch
      %54 = sbr.rel (0) target = $region21
    $region20: #{tpu_custom_call.1} parent=1 // pred_region
      %s56 = ssub.s32 1024, 1024
      %57 = vsyncadd [#allocation11], %s56
      %s58 = sshll.u32 [#allocation10], 4
      %s59 = int_to_ptr.vmem [resolvable:$true] %s58
      %64 = dma.hbm_to_vmem [thread:$0]  %s4, 1024, %s59, [#allocation11], 64, 64, 4
    $region21: #{tpu_custom_call.1} parent=1 // pred_fallthru
      _
    // Predicated region
    $region22: #{tpu_custom_call.1} parent=1 // pred_check
      _
    $region23: #{tpu_custom_call.1} parent=1 // pred_check_branch
      %66 = sbr.rel (0) target = $region25
    $region24: #{tpu_custom_call.1} parent=1 // pred_region
      _
    $region25: #{tpu_custom_call.1} parent=1 // pred_fallthru
      _
    // Predicated region
    $region26: #{tpu_custom_call.1} parent=1 // pred_check
      _
    $region27: #{tpu_custom_call.1} parent=1 // pred_check_branch
      %68 = sbr.rel (0) target = $region29
    $region28: #{tpu_custom_call.1} parent=1 // pred_region
      %69 = dma.done [#allocation5], 512
    $region29: #{tpu_custom_call.1} parent=1 // pred_fallthru
      _
    // Predicated region
    $region30: #{tpu_custom_call.1} parent=1 // pred_check
      _
    $region31: #{tpu_custom_call.1} parent=1 // pred_check_branch
      %71 = sbr.rel (0) target = $region33
    $region32: #{tpu_custom_call.1} parent=1 // pred_region
      %72 = dma.done [#allocation8], 1024
    $region33: #{tpu_custom_call.1} parent=1 // pred_fallthru
      _
    // Predicated region
    $region34: #{tpu_custom_call.1} parent=1 // pred_check
      _
    $region35: #{tpu_custom_call.1} parent=1 // pred_check_branch
      %74 = sbr.rel (0) target = $region37
    $region36: #{tpu_custom_call.1} parent=1 // pred_region
      %75 = dma.done [#allocation8], 1024
    $region37: #{tpu_custom_call.1} parent=1 // pred_fallthru
      _
    // Predicated region
    $region38: #{tpu_custom_call.1} parent=1 // pred_check
      _
    $region39: #{tpu_custom_call.1} parent=1 // pred_check_branch
      %77 = sbr.rel (0) target = $region41
    $region40: #{tpu_custom_call.1} parent=1 // pred_region
      %78 = dma.done [#allocation11], 1024
    $region41: #{tpu_custom_call.1} parent=1 // pred_fallthru
      _
    %v80 = vld [vmem:[#allocation4] sm:$0xf]
    %v81 = vld [vmem:[#allocation4 + $0x4] sm:$0xf]
    %v82 = vld [vmem:[#allocation4 + $0x8] sm:$0xf]
    %v83 = vld [vmem:[#allocation4 + $0xc] sm:$0xf]
    %v84 = vld [vmem:[#allocation4 + $0x10] sm:$0xf]
    %v85 = vld [vmem:[#allocation4 + $0x14] sm:$0xf]
    %v86 = vld [vmem:[#allocation4 + $0x18] sm:$0xf]
    %v87 = vld [vmem:[#allocation4 + $0x1c] sm:$0xf]
    %v88 = vld [vmem:[#allocation7] sm:$0xf]
    %v89 = vld [vmem:[#allocation7 + $0x4] sm:$0xf]
    %v90 = vld [vmem:[#allocation7 + $0x8] sm:$0xf]
    %v91 = vld [vmem:[#allocation7 + $0xc] sm:$0xf]
    %v92 = vld [vmem:[#allocation7 + $0x10] sm:$0xf]
    %v93 = vld [vmem:[#allocation7 + $0x14] sm:$0xf]
    %v94 = vld [vmem:[#allocation7 + $0x18] sm:$0xf]
    %v95 = vld [vmem:[#allocation7 + $0x1c] sm:$0xf]
    %v96 = vld [vmem:[#allocation7 + $0x20] sm:$0xf]
    %v97 = vld [vmem:[#allocation7 + $0x24] sm:$0xf]
    %v98 = vld [vmem:[#allocation7 + $0x28] sm:$0xf]
    %v99 = vld [vmem:[#allocation7 + $0x2c] sm:$0xf]
    %v100 = vld [vmem:[#allocation7 + $0x30] sm:$0xf]
    %v101 = vld [vmem:[#allocation7 + $0x34] sm:$0xf]
    %v102 = vld [vmem:[#allocation7 + $0x38] sm:$0xf]
    %v103 = vld [vmem:[#allocation7 + $0x3c] sm:$0xf]
    %v104 = vld [vmem:[%s3] sm:$0x1]
    %v106 = vlaneseq
    %v107 = vshrl.u32 %v106, 7
    %v108 = vsub.s32 0, %v107
    %v109 = vrot.slane %v104, %v108
    %v119 = vunpack.c.l.b16 %v80
    %v120 = vunpack.c.l.b16 %v81
    %v121 = vunpack.c.l.b16 %v82
    %v122 = vunpack.c.l.b16 %v83
    %v123 = vunpack.c.l.b16 %v84
    %v124 = vunpack.c.l.b16 %v85
    %v125 = vunpack.c.l.b16 %v86
    %v126 = vunpack.c.l.b16 %v87
    %v127 = vpack.c.b16 %v120, %v119
    %v128 = vpack.c.b16 %v122, %v121
    %v129 = vpack.c.b16 %v124, %v123
    %v130 = vpack.c.b16 %v126, %v125
    %v151 = vunpack.c.l.b16 %v88
    %v152 = vunpack.c.l.b16 %v89
    %v153 = vunpack.c.l.b16 %v90
    %v154 = vunpack.c.l.b16 %v91
    %v155 = vunpack.c.l.b16 %v92
    %v156 = vunpack.c.l.b16 %v93
    %v157 = vunpack.c.l.b16 %v94
    %v158 = vunpack.c.l.b16 %v95
    %v159 = vunpack.c.l.b16 %v96
    %v160 = vunpack.c.l.b16 %v97
    %v161 = vunpack.c.l.b16 %v98
    %v162 = vunpack.c.l.b16 %v99
    %v163 = vunpack.c.l.b16 %v100
    %v164 = vunpack.c.l.b16 %v101
    %v165 = vunpack.c.l.b16 %v102
    %v166 = vunpack.c.l.b16 %v103
    %v167 = vpack.c.b16 %v152, %v151
    %v168 = vpack.c.b16 %v154, %v153
    %v169 = vpack.c.b16 %v156, %v155
    %v170 = vpack.c.b16 %v158, %v157
    %v171 = vpack.c.b16 %v160, %v159
    %v172 = vpack.c.b16 %v162, %v161
    %v173 = vpack.c.b16 %v164, %v163
    %v174 = vpack.c.b16 %v166, %v165
    %183 = vmatprep.subr.bf16.mxu0 0
    %184 = vmatpush1.bf16.msra.mxu0 %v167
    %185 = vmatprep.subr.bf16.mxu0 0
    %186 = vmatpush1.bf16.msra.mxu0 %v168
    %187 = vmatprep.subr.bf16.mxu0 0
    %188 = vmatpush1.bf16.msra.mxu0 %v169
    %189 = vmatprep.subr.bf16.mxu0 0
    %190 = vmatpush1.bf16.msra.mxu0 %v170
    %191 = vmatprep.subr.bf16.mxu0 0
    %192 = vmatpush1.bf16.msra.mxu0 %v171
    %193 = vmatprep.subr.bf16.mxu0 0
    %194 = vmatpush1.bf16.msra.mxu0 %v172
    %195 = vmatprep.subr.bf16.mxu0 0
    %196 = vmatpush1.bf16.msra.mxu0 %v173
    %197 = vmatprep.subr.bf16.mxu0 0
    %198 = vmatpush1.bf16.msra.mxu0 %v174
    %199 = vmatprep.subr.bf16.mxu0 0
    %200 = vmatpush1.bf16.msra.mxu0 0
    %201 = vmatprep.subr.bf16.mxu0 0
    %202 = vmatpush1.bf16.msra.mxu0 0
    %203 = vmatprep.subr.bf16.mxu0 0
    %204 = vmatpush1.bf16.msra.mxu0 0
    %205 = vmatprep.subr.bf16.mxu0 0
    %206 = vmatpush1.bf16.msra.mxu0 0
    %207 = vmatprep.subr.bf16.mxu0 0
    %208 = vmatpush1.bf16.msra.mxu0 0
    %209 = vmatprep.subr.bf16.mxu0 0
    %210 = vmatpush1.bf16.msra.mxu0 0
    %211 = vmatprep.subr.bf16.mxu0 0
    %212 = vmatpush1.bf16.msra.mxu0 0
    %213 = vmatprep.subr.bf16.mxu0 0
    %214 = vmatpush1.bf16.msra.mxu0 0
    %215 = vmatprep.mubr.bf16.mxu0 0
    %216 = vmatmul.mubr.bf16.gmra.mrb[0].mxu0 %v127
    %v217 = vpop.f32.mrb[0].mxu0
    %v218 = vadd.f32 %v109, %v217
    %v219 = vpop.f32.mrb[0].mxu0
    %v220 = vpop.f32.mrb[0].mxu0
    %v221 = vadd.f32 %v109, %v220
    %v222 = vpop.f32.mrb[0].mxu0
    %223 = vmatprep.mubr.bf16.mxu0 0
    %224 = vmatmul.mubr.bf16.gmra.mrb[0].mxu0 %v128
    %v225 = vpop.f32.mrb[0].mxu0
    %v226 = vadd.f32 %v109, %v225
    %v227 = vpop.f32.mrb[0].mxu0
    %v228 = vpop.f32.mrb[0].mxu0
    %v229 = vadd.f32 %v109, %v228
    %v230 = vpop.f32.mrb[0].mxu0
    %231 = vmatprep.mubr.bf16.mxu0 0
    %232 = vmatmul.mubr.bf16.gmra.mrb[0].mxu0 %v129
    %v233 = vpop.f32.mrb[0].mxu0
    %v234 = vadd.f32 %v109, %v233
    %v235 = vpop.f32.mrb[0].mxu0
    %v236 = vpop.f32.mrb[0].mxu0
    %v237 = vadd.f32 %v109, %v236
    %v238 = vpop.f32.mrb[0].mxu0
    %239 = vmatprep.mubr.bf16.mxu0 0
    %240 = vmatmul.mubr.bf16.gmra.mrb[0].mxu0 %v130
    %v241 = vpop.f32.mrb[0].mxu0
    %v242 = vadd.f32 %v109, %v241
    %v243 = vpop.f32.mrb[0].mxu0
    %v244 = vpop.f32.mrb[0].mxu0
    %v245 = vadd.f32 %v109, %v244
    %v246 = vpop.f32.mrb[0].mxu0
    %247 = vdwg.mxu0
    %248 = vst [vmem:[#allocation2] sm:$0xff] %v218
    %249 = vst [vmem:[#allocation2 + $0x8] sm:$0xff] %v221
    %250 = vst [vmem:[#allocation2 + $0x10] sm:$0xff] %v226
    %251 = vst [vmem:[#allocation2 + $0x18] sm:$0xff] %v229
    %252 = vst [vmem:[#allocation2 + $0x20] sm:$0xff] %v234
    %253 = vst [vmem:[#allocation2 + $0x28] sm:$0xff] %v237
    %254 = vst [vmem:[#allocation2 + $0x30] sm:$0xff] %v242
    %255 = vst [vmem:[#allocation2 + $0x38] sm:$0xff] %v245
    %v256 = vlaneseq
    %v257 = vand.u32 %v256, 127
    %vm258 = vcmp.ge.s32.totalorder %v257, 64
    %vm259 = vcmp.lt.s32.totalorder %v257, 96
    %vm260 = vmand %vm258, %vm259
    %v261 = vld [vmem:[#allocation9] sm:$0xf]
    %v262 = vld [vmem:[#allocation9 + $0x4] sm:$0xf]
    %v263 = vld [vmem:[#allocation9 + $0x8] sm:$0xf]
    %v264 = vld [vmem:[#allocation9 + $0xc] sm:$0xf]
    %v265 = vld [vmem:[#allocation9 + $0x10] sm:$0xf]
    %v266 = vld [vmem:[#allocation9 + $0x14] sm:$0xf]
    %v267 = vld [vmem:[#allocation9 + $0x18] sm:$0xf]
    %v268 = vld [vmem:[#allocation9 + $0x1c] sm:$0xf]
    %v269 = vld [vmem:[#allocation9 + $0x20] sm:$0xf]
    %v270 = vld [vmem:[#allocation9 + $0x24] sm:$0xf]
    %v271 = vld [vmem:[#allocation9 + $0x28] sm:$0xf]
    %v272 = vld [vmem:[#allocation9 + $0x2c] sm:$0xf]
    %v273 = vld [vmem:[#allocation9 + $0x30] sm:$0xf]
    %v274 = vld [vmem:[#allocation9 + $0x34] sm:$0xf]
    %v275 = vld [vmem:[#allocation9 + $0x38] sm:$0xf]
    %v276 = vld [vmem:[#allocation9 + $0x3c] sm:$0xf]
    %v277 = vld [vmem:[#allocation2] sm:$0xff]
    %v294 = vunpack.c.l.b16 %v261
    %v295 = vunpack.c.l.b16 %v262
    %v296 = vunpack.c.l.b16 %v263
    %v297 = vunpack.c.l.b16 %v264
    %v298 = vunpack.c.l.b16 %v265
    %v299 = vunpack.c.l.b16 %v266
    %v300 = vunpack.c.l.b16 %v267
    %v301 = vunpack.c.l.b16 %v268
    %v302 = vunpack.c.l.b16 %v269
    %v303 = vunpack.c.l.b16 %v270
    %v304 = vunpack.c.l.b16 %v271
    %v305 = vunpack.c.l.b16 %v272
    %v306 = vunpack.c.l.b16 %v273
    %v307 = vunpack.c.l.b16 %v274
    %v308 = vunpack.c.l.b16 %v275
    %v309 = vunpack.c.l.b16 %v276
    %v310 = vpack.c.b16 %v295, %v294
    %v311 = vpack.c.b16 %v297, %v296
    %v312 = vpack.c.b16 %v299, %v298
    %v313 = vpack.c.b16 %v301, %v300
    %v314 = vpack.c.b16 %v303, %v302
    %v315 = vpack.c.b16 %v305, %v304
    %v316 = vpack.c.b16 %v307, %v306
    %v317 = vpack.c.b16 %v309, %v308
    %326 = vmatprep.subr.bf16.mxu0 0
    %327 = vmatpush1.bf16.msra.mxu0 %v310
    %328 = vmatprep.subr.bf16.mxu0 0
    %329 = vmatpush1.bf16.msra.mxu0 %v311
    %330 = vmatprep.subr.bf16.mxu0 0
    %331 = vmatpush1.bf16.msra.mxu0 %v312
    %332 = vmatprep.subr.bf16.mxu0 0
    %333 = vmatpush1.bf16.msra.mxu0 %v313
    %334 = vmatprep.subr.bf16.mxu0 0
    %335 = vmatpush1.bf16.msra.mxu0 %v314
    %336 = vmatprep.subr.bf16.mxu0 0
    %337 = vmatpush1.bf16.msra.mxu0 %v315
    %338 = vmatprep.subr.bf16.mxu0 0
    %339 = vmatpush1.bf16.msra.mxu0 %v316
    %340 = vmatprep.subr.bf16.mxu0 0
    %341 = vmatpush1.bf16.msra.mxu0 %v317
    %342 = vmatprep.subr.bf16.mxu0 0
    %343 = vmatpush1.bf16.msra.mxu0 0
    %344 = vmatprep.subr.bf16.mxu0 0
    %345 = vmatpush1.bf16.msra.mxu0 0
    %346 = vmatprep.subr.bf16.mxu0 0
    %347 = vmatpush1.bf16.msra.mxu0 0
    %348 = vmatprep.subr.bf16.mxu0 0
    %349 = vmatpush1.bf16.msra.mxu0 0
    %350 = vmatprep.subr.bf16.mxu0 0
    %351 = vmatpush1.bf16.msra.mxu0 0
    %352 = vmatprep.subr.bf16.mxu0 0
    %353 = vmatpush1.bf16.msra.mxu0 0
    %354 = vmatprep.subr.bf16.mxu0 0
    %355 = vmatpush1.bf16.msra.mxu0 0
    %356 = vmatprep.subr.bf16.mxu0 0
    %357 = vmatpush1.bf16.msra.mxu0 0
    %358 = vmatprep.mubr.bf16.mxu0 0
    %359 = vmatmul.mubr.bf16.gmra.mrb[0].mxu0 0
    %v360 = vpop.f32.mrb[0].mxu0
    %v361 = vadd.f32 0.0, %v360
    %v362 = vpop.f32.mrb[0].mxu0
    %v363 = vpop.f32.mrb[0].mxu0
    %v364 = vpop.f32.mrb[0].mxu0
    %365 = vdwg.mxu0
    %v366 = vadd.f32 %v277, %v361
    %v367 = vtanh.pop %v366
    %v368 = vxor.u32 %v366, 2147483648
    %v369 = vmul.f32 %v368, 1.442695
    %v370 = vpow.pop %v369
    %v371 = vadd.f32 %v370, 1.0
    %v372 = vrcp.pop %v371
    %v373 = vmul.f32 1.0, %v372
    %v374 = vsel %vm260, %v367, %v373
    %375 = vrot.lane.b32.xlu0 %v374, 96
    %v376 = vpop.permute.xlu0 %375
    %377 = vrot.lane.b32.xlu0 %v374, 64
    %v378 = vpop.permute.xlu0 %377
    %379 = vrot.lane.b32.xlu0 %v374, 32
    %v380 = vpop.permute.xlu0 %379
    %v381 = vmul.f32 %v376, 0.0
    %v382 = vmul.f32 %v374, %v378
    %v383 = vadd.f32 %v381, %v382
    %v384 = vtanh.pop %v383
    %v385 = vmul.f32 %v380, %v384
    %386 = vst [vmem:[#allocation3] sm:$0xff] %v385
    %v387 = vld [vmem:[#allocation9] sm:$0xf]
    %v388 = vld [vmem:[#allocation9 + $0x4] sm:$0xf]
    %v389 = vld [vmem:[#allocation9 + $0x8] sm:$0xf]
    %v390 = vld [vmem:[#allocation9 + $0xc] sm:$0xf]
    %v391 = vld [vmem:[#allocation9 + $0x10] sm:$0xf]
    %v392 = vld [vmem:[#allocation9 + $0x14] sm:$0xf]
    %v393 = vld [vmem:[#allocation9 + $0x18] sm:$0xf]
    %v394 = vld [vmem:[#allocation9 + $0x1c] sm:$0xf]
    %v395 = vld [vmem:[#allocation9 + $0x20] sm:$0xf]
    %v396 = vld [vmem:[#allocation9 + $0x24] sm:$0xf]
    %v397 = vld [vmem:[#allocation9 + $0x28] sm:$0xf]
    %v398 = vld [vmem:[#allocation9 + $0x2c] sm:$0xf]
    %v399 = vld [vmem:[#allocation9 + $0x30] sm:$0xf]
    %v400 = vld [vmem:[#allocation9 + $0x34] sm:$0xf]
    %v401 = vld [vmem:[#allocation9 + $0x38] sm:$0xf]
    %v402 = vld [vmem:[#allocation9 + $0x3c] sm:$0xf]
    %v403 = vld [vmem:[#allocation2 + $0x8] sm:$0xff]
    %v404 = vpack.c.bf16 %v385, %v385
    %v421 = vunpack.c.l.b16 %v387
    %v422 = vunpack.c.l.b16 %v388
    %v423 = vunpack.c.l.b16 %v389
    %v424 = vunpack.c.l.b16 %v390
    %v425 = vunpack.c.l.b16 %v391
    %v426 = vunpack.c.l.b16 %v392
    %v427 = vunpack.c.l.b16 %v393
    %v428 = vunpack.c.l.b16 %v394
    %v429 = vunpack.c.l.b16 %v395
    %v430 = vunpack.c.l.b16 %v396
    %v431 = vunpack.c.l.b16 %v397
    %v432 = vunpack.c.l.b16 %v398
    %v433 = vunpack.c.l.b16 %v399
    %v434 = vunpack.c.l.b16 %v400
    %v435 = vunpack.c.l.b16 %v401
    %v436 = vunpack.c.l.b16 %v402
    %v437 = vpack.c.b16 %v422, %v421
    %v438 = vpack.c.b16 %v424, %v423
    %v439 = vpack.c.b16 %v426, %v425
    %v440 = vpack.c.b16 %v428, %v427
    %v441 = vpack.c.b16 %v430, %v429
    %v442 = vpack.c.b16 %v432, %v431
    %v443 = vpack.c.b16 %v434, %v433
    %v444 = vpack.c.b16 %v436, %v435
    %453 = vmatprep.subr.bf16.mxu0 0
    %454 = vmatpush1.bf16.msra.mxu0 %v437
    %455 = vmatprep.subr.bf16.mxu0 0
    %456 = vmatpush1.bf16.msra.mxu0 %v438
    %457 = vmatprep.subr.bf16.mxu0 0
    %458 = vmatpush1.bf16.msra.mxu0 %v439
    %459 = vmatprep.subr.bf16.mxu0 0
    %460 = vmatpush1.bf16.msra.mxu0 %v440
    %461 = vmatprep.subr.bf16.mxu0 0
    %462 = vmatpush1.bf16.msra.mxu0 %v441
    %463 = vmatprep.subr.bf16.mxu0 0
    %464 = vmatpush1.bf16.msra.mxu0 %v442
    %465 = vmatprep.subr.bf16.mxu0 0
    %466 = vmatpush1.bf16.msra.mxu0 %v443
    %467 = vmatprep.subr.bf16.mxu0 0
    %468 = vmatpush1.bf16.msra.mxu0 %v444
    %469 = vmatprep.subr.bf16.mxu0 0
    %470 = vmatpush1.bf16.msra.mxu0 0
    %471 = vmatprep.subr.bf16.mxu0 0
    %472 = vmatpush1.bf16.msra.mxu0 0
    %473 = vmatprep.subr.bf16.mxu0 0
    %474 = vmatpush1.bf16.msra.mxu0 0
    %475 = vmatprep.subr.bf16.mxu0 0
    %476 = vmatpush1.bf16.msra.mxu0 0
    %477 = vmatprep.subr.bf16.mxu0 0
    %478 = vmatpush1.bf16.msra.mxu0 0
    %479 = vmatprep.subr.bf16.mxu0 0
    %480 = vmatpush1.bf16.msra.mxu0 0
    %481 = vmatprep.subr.bf16.mxu0 0
    %482 = vmatpush1.bf16.msra.mxu0 0
    %483 = vmatprep.subr.bf16.mxu0 0
    %484 = vmatpush1.bf16.msra.mxu0 0
    %485 = vmatprep.mubr.bf16.mxu0 0
    %486 = vmatmul.mubr.bf16.gmra.mrb[0].mxu0 %v404
    %v487 = vpop.f32.mrb[0].mxu0
    %v488 = vadd.f32 0.0, %v487
    %v489 = vpop.f32.mrb[0].mxu0
    %v490 = vpop.f32.mrb[0].mxu0
    %v491 = vpop.f32.mrb[0].mxu0
    %492 = vdwg.mxu0
    %v493 = vadd.f32 %v403, %v488
    %v494 = vtanh.pop %v493
    %v495 = vxor.u32 %v493, 2147483648
    %v496 = vmul.f32 %v495, 1.442695
    %v497 = vpow.pop %v496
    %v498 = vadd.f32 %v497, 1.0
    %v499 = vrcp.pop %v498
    %v500 = vmul.f32 1.0, %v499
    %v501 = vsel %vm260, %v494, %v500
    %502 = vrot.lane.b32.xlu0 %v501, 96
    %v503 = vpop.permute.xlu0 %502
    %504 = vrot.lane.b32.xlu0 %v501, 64
    %v505 = vpop.permute.xlu0 %504
    %506 = vrot.lane.b32.xlu0 %v501, 32
    %v507 = vpop.permute.xlu0 %506
    %v508 = vmul.f32 %v503, %v383
    %v509 = vmul.f32 %v501, %v505
    %v510 = vadd.f32 %v508, %v509
    %v511 = vtanh.pop %v510
    %v512 = vmul.f32 %v507, %v511
    %513 = vst [vmem:[#allocation3 + $0x8] sm:$0xff] %v512
    %v514 = vld [vmem:[#allocation9] sm:$0xf]
    %v515 = vld [vmem:[#allocation9 + $0x4] sm:$0xf]
    %v516 = vld [vmem:[#allocation9 + $0x8] sm:$0xf]
    %v517 = vld [vmem:[#allocation9 + $0xc] sm:$0xf]
    %v518 = vld [vmem:[#allocation9 + $0x10] sm:$0xf]
    %v519 = vld [vmem:[#allocation9 + $0x14] sm:$0xf]
    %v520 = vld [vmem:[#allocation9 + $0x18] sm:$0xf]
    %v521 = vld [vmem:[#allocation9 + $0x1c] sm:$0xf]
    %v522 = vld [vmem:[#allocation9 + $0x20] sm:$0xf]
    %v523 = vld [vmem:[#allocation9 + $0x24] sm:$0xf]
    %v524 = vld [vmem:[#allocation9 + $0x28] sm:$0xf]
    %v525 = vld [vmem:[#allocation9 + $0x2c] sm:$0xf]
    %v526 = vld [vmem:[#allocation9 + $0x30] sm:$0xf]
    %v527 = vld [vmem:[#allocation9 + $0x34] sm:$0xf]
    %v528 = vld [vmem:[#allocation9 + $0x38] sm:$0xf]
    %v529 = vld [vmem:[#allocation9 + $0x3c] sm:$0xf]
    %v530 = vld [vmem:[#allocation2 + $0x10] sm:$0xff]
    %v531 = vpack.c.bf16 %v512, %v512
    %v548 = vunpack.c.l.b16 %v514
    %v549 = vunpack.c.l.b16 %v515
    %v550 = vunpack.c.l.b16 %v516
    %v551 = vunpack.c.l.b16 %v517
    %v552 = vunpack.c.l.b16 %v518
    %v553 = vunpack.c.l.b16 %v519
    %v554 = vunpack.c.l.b16 %v520
    %v555 = vunpack.c.l.b16 %v521
    %v556 = vunpack.c.l.b16 %v522
    %v557 = vunpack.c.l.b16 %v523
    %v558 = vunpack.c.l.b16 %v524
    %v559 = vunpack.c.l.b16 %v525
    %v560 = vunpack.c.l.b16 %v526
    %v561 = vunpack.c.l.b16 %v527
    %v562 = vunpack.c.l.b16 %v528
    %v563 = vunpack.c.l.b16 %v529
    %v564 = vpack.c.b16 %v549, %v548
    %v565 = vpack.c.b16 %v551, %v550
    %v566 = vpack.c.b16 %v553, %v552
    %v567 = vpack.c.b16 %v555, %v554
    %v568 = vpack.c.b16 %v557, %v556
    %v569 = vpack.c.b16 %v559, %v558
    %v570 = vpack.c.b16 %v561, %v560
    %v571 = vpack.c.b16 %v563, %v562
    %580 = vmatprep.subr.bf16.mxu0 0
    %581 = vmatpush1.bf16.msra.mxu0 %v564
    %582 = vmatprep.subr.bf16.mxu0 0
    %583 = vmatpush1.bf16.msra.mxu0 %v565
    %584 = vmatprep.subr.bf16.mxu0 0
    %585 = vmatpush1.bf16.msra.mxu0 %v566
    %586 = vmatprep.subr.bf16.mxu0 0
    %587 = vmatpush1.bf16.msra.mxu0 %v567
    %588 = vmatprep.subr.bf16.mxu0 0
    %589 = vmatpush1.bf16.msra.mxu0 %v568
    %590 = vmatprep.subr.bf16.mxu0 0
    %591 = vmatpush1.bf16.msra.mxu0 %v569
    %592 = vmatprep.subr.bf16.mxu0 0
    %593 = vmatpush1.bf16.msra.mxu0 %v570
    %594 = vmatprep.subr.bf16.mxu0 0
    %595 = vmatpush1.bf16.msra.mxu0 %v571
    %596 = vmatprep.subr.bf16.mxu0 0
    %597 = vmatpush1.bf16.msra.mxu0 0
    %598 = vmatprep.subr.bf16.mxu0 0
    %599 = vmatpush1.bf16.msra.mxu0 0
    %600 = vmatprep.subr.bf16.mxu0 0
    %601 = vmatpush1.bf16.msra.mxu0 0
    %602 = vmatprep.subr.bf16.mxu0 0
    %603 = vmatpush1.bf16.msra.mxu0 0
    %604 = vmatprep.subr.bf16.mxu0 0
    %605 = vmatpush1.bf16.msra.mxu0 0
    %606 = vmatprep.subr.bf16.mxu0 0
    %607 = vmatpush1.bf16.msra.mxu0 0
    %608 = vmatprep.subr.bf16.mxu0 0
    %609 = vmatpush1.bf16.msra.mxu0 0
    %610 = vmatprep.subr.bf16.mxu0 0
    %611 = vmatpush1.bf16.msra.mxu0 0
    %612 = vmatprep.mubr.bf16.mxu0 0
    %613 = vmatmul.mubr.bf16.gmra.mrb[0].mxu0 %v531
    %v614 = vpop.f32.mrb[0].mxu0
    %v615 = vadd.f32 0.0, %v614
    %v616 = vpop.f32.mrb[0].mxu0
    %v617 = vpop.f32.mrb[0].mxu0
    %v618 = vpop.f32.mrb[0].mxu0
    %619 = vdwg.mxu0
    %v620 = vadd.f32 %v530, %v615
    %v621 = vtanh.pop %v620
    %v622 = vxor.u32 %v620, 2147483648
    %v623 = vmul.f32 %v622, 1.442695
    %v624 = vpow.pop %v623
    %v625 = vadd.f32 %v624, 1.0
    %v626 = vrcp.pop %v625
    %v627 = vmul.f32 1.0, %v626
    %v628 = vsel %vm260, %v621, %v627
    %629 = vrot.lane.b32.xlu0 %v628, 96
    %v630 = vpop.permute.xlu0 %629
    %631 = vrot.lane.b32.xlu0 %v628, 64
    %v632 = vpop.permute.xlu0 %631
    %633 = vrot.lane.b32.xlu0 %v628, 32
    %v634 = vpop.permute.xlu0 %633
    %v635 = vmul.f32 %v630, %v510
    %v636 = vmul.f32 %v628, %v632
    %v637 = vadd.f32 %v635, %v636
    %v638 = vtanh.pop %v637
    %v639 = vmul.f32 %v634, %v638
    %640 = vst [vmem:[#allocation3 + $0x10] sm:$0xff] %v639
    %v641 = vld [vmem:[#allocation9] sm:$0xf]
    %v642 = vld [vmem:[#allocation9 + $0x4] sm:$0xf]
    %v643 = vld [vmem:[#allocation9 + $0x8] sm:$0xf]
    %v644 = vld [vmem:[#allocation9 + $0xc] sm:$0xf]
    %v645 = vld [vmem:[#allocation9 + $0x10] sm:$0xf]
    %v646 = vld [vmem:[#allocation9 + $0x14] sm:$0xf]
    %v647 = vld [vmem:[#allocation9 + $0x18] sm:$0xf]
    %v648 = vld [vmem:[#allocation9 + $0x1c] sm:$0xf]
    %v649 = vld [vmem:[#allocation9 + $0x20] sm:$0xf]
    %v650 = vld [vmem:[#allocation9 + $0x24] sm:$0xf]
    %v651 = vld [vmem:[#allocation9 + $0x28] sm:$0xf]
    %v652 = vld [vmem:[#allocation9 + $0x2c] sm:$0xf]
    %v653 = vld [vmem:[#allocation9 + $0x30] sm:$0xf]
    %v654 = vld [vmem:[#allocation9 + $0x34] sm:$0xf]
    %v655 = vld [vmem:[#allocation9 + $0x38] sm:$0xf]
    %v656 = vld [vmem:[#allocation9 + $0x3c] sm:$0xf]
    %v657 = vld [vmem:[#allocation2 + $0x18] sm:$0xff]
    %v658 = vpack.c.bf16 %v639, %v639
    %v675 = vunpack.c.l.b16 %v641
    %v676 = vunpack.c.l.b16 %v642
    %v677 = vunpack.c.l.b16 %v643
    %v678 = vunpack.c.l.b16 %v644
    %v679 = vunpack.c.l.b16 %v645
    %v680 = vunpack.c.l.b16 %v646
    %v681 = vunpack.c.l.b16 %v647
    %v682 = vunpack.c.l.b16 %v648
    %v683 = vunpack.c.l.b16 %v649
    %v684 = vunpack.c.l.b16 %v650
    %v685 = vunpack.c.l.b16 %v651
    %v686 = vunpack.c.l.b16 %v652
    %v687 = vunpack.c.l.b16 %v653
    %v688 = vunpack.c.l.b16 %v654
    %v689 = vunpack.c.l.b16 %v655
    %v690 = vunpack.c.l.b16 %v656
    %v691 = vpack.c.b16 %v676, %v675
    %v692 = vpack.c.b16 %v678, %v677
    %v693 = vpack.c.b16 %v680, %v679
    %v694 = vpack.c.b16 %v682, %v681
    %v695 = vpack.c.b16 %v684, %v683
    %v696 = vpack.c.b16 %v686, %v685
    %v697 = vpack.c.b16 %v688, %v687
    %v698 = vpack.c.b16 %v690, %v689
    %707 = vmatprep.subr.bf16.mxu0 0
    %708 = vmatpush1.bf16.msra.mxu0 %v691
    %709 = vmatprep.subr.bf16.mxu0 0
    %710 = vmatpush1.bf16.msra.mxu0 %v692
    %711 = vmatprep.subr.bf16.mxu0 0
    %712 = vmatpush1.bf16.msra.mxu0 %v693
    %713 = vmatprep.subr.bf16.mxu0 0
    %714 = vmatpush1.bf16.msra.mxu0 %v694
    %715 = vmatprep.subr.bf16.mxu0 0
    %716 = vmatpush1.bf16.msra.mxu0 %v695
    %717 = vmatprep.subr.bf16.mxu0 0
    %718 = vmatpush1.bf16.msra.mxu0 %v696
    %719 = vmatprep.subr.bf16.mxu0 0
    %720 = vmatpush1.bf16.msra.mxu0 %v697
    %721 = vmatprep.subr.bf16.mxu0 0
    %722 = vmatpush1.bf16.msra.mxu0 %v698
    %723 = vmatprep.subr.bf16.mxu0 0
    %724 = vmatpush1.bf16.msra.mxu0 0
    %725 = vmatprep.subr.bf16.mxu0 0
    %726 = vmatpush1.bf16.msra.mxu0 0
    %727 = vmatprep.subr.bf16.mxu0 0
    %728 = vmatpush1.bf16.msra.mxu0 0
    %729 = vmatprep.subr.bf16.mxu0 0
    %730 = vmatpush1.bf16.msra.mxu0 0
    %731 = vmatprep.subr.bf16.mxu0 0
    %732 = vmatpush1.bf16.msra.mxu0 0
    %733 = vmatprep.subr.bf16.mxu0 0
    %734 = vmatpush1.bf16.msra.mxu0 0
    %735 = vmatprep.subr.bf16.mxu0 0
    %736 = vmatpush1.bf16.msra.mxu0 0
    %737 = vmatprep.subr.bf16.mxu0 0
    %738 = vmatpush1.bf16.msra.mxu0 0
    %739 = vmatprep.mubr.bf16.mxu0 0
    %740 = vmatmul.mubr.bf16.gmra.mrb[0].mxu0 %v658
    %v741 = vpop.f32.mrb[0].mxu0
    %v742 = vadd.f32 0.0, %v741
    %v743 = vpop.f32.mrb[0].mxu0
    %v744 = vpop.f32.mrb[0].mxu0
    %v745 = vpop.f32.mrb[0].mxu0
    %746 = vdwg.mxu0
    %v747 = vadd.f32 %v657, %v742
    %v748 = vtanh.pop %v747
    %v749 = vxor.u32 %v747, 2147483648
    %v750 = vmul.f32 %v749, 1.442695
    %v751 = vpow.pop %v750
    %v752 = vadd.f32 %v751, 1.0
    %v753 = vrcp.pop %v752
    %v754 = vmul.f32 1.0, %v753
    %v755 = vsel %vm260, %v748, %v754
    %756 = vrot.lane.b32.xlu0 %v755, 96
    %v757 = vpop.permute.xlu0 %756
    %758 = vrot.lane.b32.xlu0 %v755, 64
    %v759 = vpop.permute.xlu0 %758
    %760 = vrot.lane.b32.xlu0 %v755, 32
    %v761 = vpop.permute.xlu0 %760
    %v762 = vmul.f32 %v757, %v637
    %v763 = vmul.f32 %v755, %v759
    %v764 = vadd.f32 %v762, %v763
    %v765 = vtanh.pop %v764
    %v766 = vmul.f32 %v761, %v765
    %767 = vst [vmem:[#allocation3 + $0x18] sm:$0xff] %v766
    %v768 = vld [vmem:[#allocation9] sm:$0xf]
    %v769 = vld [vmem:[#allocation9 + $0x4] sm:$0xf]
    %v770 = vld [vmem:[#allocation9 + $0x8] sm:$0xf]
    %v771 = vld [vmem:[#allocation9 + $0xc] sm:$0xf]
    %v772 = vld [vmem:[#allocation9 + $0x10] sm:$0xf]
    %v773 = vld [vmem:[#allocation9 + $0x14] sm:$0xf]
    %v774 = vld [vmem:[#allocation9 + $0x18] sm:$0xf]
    %v775 = vld [vmem:[#allocation9 + $0x1c] sm:$0xf]
    %v776 = vld [vmem:[#allocation9 + $0x20] sm:$0xf]
    %v777 = vld [vmem:[#allocation9 + $0x24] sm:$0xf]
    %v778 = vld [vmem:[#allocation9 + $0x28] sm:$0xf]
    %v779 = vld [vmem:[#allocation9 + $0x2c] sm:$0xf]
    %v780 = vld [vmem:[#allocation9 + $0x30] sm:$0xf]
    %v781 = vld [vmem:[#allocation9 + $0x34] sm:$0xf]
    %v782 = vld [vmem:[#allocation9 + $0x38] sm:$0xf]
    %v783 = vld [vmem:[#allocation9 + $0x3c] sm:$0xf]
    %v784 = vld [vmem:[#allocation2 + $0x20] sm:$0xff]
    %v785 = vpack.c.bf16 %v766, %v766
    %v802 = vunpack.c.l.b16 %v768
    %v803 = vunpack.c.l.b16 %v769
    %v804 = vunpack.c.l.b16 %v770
    %v805 = vunpack.c.l.b16 %v771
    %v806 = vunpack.c.l.b16 %v772
    %v807 = vunpack.c.l.b16 %v773
    %v808 = vunpack.c.l.b16 %v774
    %v809 = vunpack.c.l.b16 %v775
    %v810 = vunpack.c.l.b16 %v776
    %v811 = vunpack.c.l.b16 %v777
    %v812 = vunpack.c.l.b16 %v778
    %v813 = vunpack.c.l.b16 %v779
    %v814 = vunpack.c.l.b16 %v780
    %v815 = vunpack.c.l.b16 %v781
    %v816 = vunpack.c.l.b16 %v782
    %v817 = vunpack.c.l.b16 %v783
    %v818 = vpack.c.b16 %v803, %v802
    %v819 = vpack.c.b16 %v805, %v804
    %v820 = vpack.c.b16 %v807, %v806
    %v821 = vpack.c.b16 %v809, %v808
    %v822 = vpack.c.b16 %v811, %v810
    %v823 = vpack.c.b16 %v813, %v812
    %v824 = vpack.c.b16 %v815, %v814
    %v825 = vpack.c.b16 %v817, %v816
    %834 = vmatprep.subr.bf16.mxu0 0
    %835 = vmatpush1.bf16.msra.mxu0 %v818
    %836 = vmatprep.subr.bf16.mxu0 0
    %837 = vmatpush1.bf16.msra.mxu0 %v819
    %838 = vmatprep.subr.bf16.mxu0 0
    %839 = vmatpush1.bf16.msra.mxu0 %v820
    %840 = vmatprep.subr.bf16.mxu0 0
    %841 = vmatpush1.bf16.msra.mxu0 %v821
    %842 = vmatprep.subr.bf16.mxu0 0
    %843 = vmatpush1.bf16.msra.mxu0 %v822
    %844 = vmatprep.subr.bf16.mxu0 0
    %845 = vmatpush1.bf16.msra.mxu0 %v823
    %846 = vmatprep.subr.bf16.mxu0 0
    %847 = vmatpush1.bf16.msra.mxu0 %v824
    %848 = vmatprep.subr.bf16.mxu0 0
    %849 = vmatpush1.bf16.msra.mxu0 %v825
    %850 = vmatprep.subr.bf16.mxu0 0
    %851 = vmatpush1.bf16.msra.mxu0 0
    %852 = vmatprep.subr.bf16.mxu0 0
    %853 = vmatpush1.bf16.msra.mxu0 0
    %854 = vmatprep.subr.bf16.mxu0 0
    %855 = vmatpush1.bf16.msra.mxu0 0
    %856 = vmatprep.subr.bf16.mxu0 0
    %857 = vmatpush1.bf16.msra.mxu0 0
    %858 = vmatprep.subr.bf16.mxu0 0
    %859 = vmatpush1.bf16.msra.mxu0 0
    %860 = vmatprep.subr.bf16.mxu0 0
    %861 = vmatpush1.bf16.msra.mxu0 0
    %862 = vmatprep.subr.bf16.mxu0 0
    %863 = vmatpush1.bf16.msra.mxu0 0
    %864 = vmatprep.subr.bf16.mxu0 0
    %865 = vmatpush1.bf16.msra.mxu0 0
    %866 = vmatprep.mubr.bf16.mxu0 0
    %867 = vmatmul.mubr.bf16.gmra.mrb[0].mxu0 %v785
    %v868 = vpop.f32.mrb[0].mxu0
    %v869 = vadd.f32 0.0, %v868
    %v870 = vpop.f32.mrb[0].mxu0
    %v871 = vpop.f32.mrb[0].mxu0
    %v872 = vpop.f32.mrb[0].mxu0
    %873 = vdwg.mxu0
    %v874 = vadd.f32 %v784, %v869
    %v875 = vtanh.pop %v874
    %v876 = vxor.u32 %v874, 2147483648
    %v877 = vmul.f32 %v876, 1.442695
    %v878 = vpow.pop %v877
    %v879 = vadd.f32 %v878, 1.0
    %v880 = vrcp.pop %v879
    %v881 = vmul.f32 1.0, %v880
    %v882 = vsel %vm260, %v875, %v881
    %883 = vrot.lane.b32.xlu0 %v882, 96
    %v884 = vpop.permute.xlu0 %883
    %885 = vrot.lane.b32.xlu0 %v882, 64
    %v886 = vpop.permute.xlu0 %885
    %887 = vrot.lane.b32.xlu0 %v882, 32
    %v888 = vpop.permute.xlu0 %887
    %v889 = vmul.f32 %v884, %v764
    %v890 = vmul.f32 %v882, %v886
    %v891 = vadd.f32 %v889, %v890
    %v892 = vtanh.pop %v891
    %v893 = vmul.f32 %v888, %v892
    %894 = vst [vmem:[#allocation3 + $0x20] sm:$0xff] %v893
    %v895 = vld [vmem:[#allocation9] sm:$0xf]
    %v896 = vld [vmem:[#allocation9 + $0x4] sm:$0xf]
    %v897 = vld [vmem:[#allocation9 + $0x8] sm:$0xf]
    %v898 = vld [vmem:[#allocation9 + $0xc] sm:$0xf]
    %v899 = vld [vmem:[#allocation9 + $0x10] sm:$0xf]
    %v900 = vld [vmem:[#allocation9 + $0x14] sm:$0xf]
    %v901 = vld [vmem:[#allocation9 + $0x18] sm:$0xf]
    %v902 = vld [vmem:[#allocation9 + $0x1c] sm:$0xf]
    %v903 = vld [vmem:[#allocation9 + $0x20] sm:$0xf]
    %v904 = vld [vmem:[#allocation9 + $0x24] sm:$0xf]
    %v905 = vld [vmem:[#allocation9 + $0x28] sm:$0xf]
    %v906 = vld [vmem:[#allocation9 + $0x2c] sm:$0xf]
    %v907 = vld [vmem:[#allocation9 + $0x30] sm:$0xf]
    %v908 = vld [vmem:[#allocation9 + $0x34] sm:$0xf]
    %v909 = vld [vmem:[#allocation9 + $0x38] sm:$0xf]
    %v910 = vld [vmem:[#allocation9 + $0x3c] sm:$0xf]
    %v911 = vld [vmem:[#allocation2 + $0x28] sm:$0xff]
    %v912 = vpack.c.bf16 %v893, %v893
    %v929 = vunpack.c.l.b16 %v895
    %v930 = vunpack.c.l.b16 %v896
    %v931 = vunpack.c.l.b16 %v897
    %v932 = vunpack.c.l.b16 %v898
    %v933 = vunpack.c.l.b16 %v899
    %v934 = vunpack.c.l.b16 %v900
    %v935 = vunpack.c.l.b16 %v901
    %v936 = vunpack.c.l.b16 %v902
    %v937 = vunpack.c.l.b16 %v903
    %v938 = vunpack.c.l.b16 %v904
    %v939 = vunpack.c.l.b16 %v905
    %v940 = vunpack.c.l.b16 %v906
    %v941 = vunpack.c.l.b16 %v907
    %v942 = vunpack.c.l.b16 %v908
    %v943 = vunpack.c.l.b16 %v909
    %v944 = vunpack.c.l.b16 %v910
    %v945 = vpack.c.b16 %v930, %v929
    %v946 = vpack.c.b16 %v932, %v931
    %v947 = vpack.c.b16 %v934, %v933
    %v948 = vpack.c.b16 %v936, %v935
    %v949 = vpack.c.b16 %v938, %v937
    %v950 = vpack.c.b16 %v940, %v939
    %v951 = vpack.c.b16 %v942, %v941
    %v952 = vpack.c.b16 %v944, %v943
    %961 = vmatprep.subr.bf16.mxu0 0
    %962 = vmatpush1.bf16.msra.mxu0 %v945
    %963 = vmatprep.subr.bf16.mxu0 0
    %964 = vmatpush1.bf16.msra.mxu0 %v946
    %965 = vmatprep.subr.bf16.mxu0 0
    %966 = vmatpush1.bf16.msra.mxu0 %v947
    %967 = vmatprep.subr.bf16.mxu0 0
    %968 = vmatpush1.bf16.msra.mxu0 %v948
    %969 = vmatprep.subr.bf16.mxu0 0
    %970 = vmatpush1.bf16.msra.mxu0 %v949
    %971 = vmatprep.subr.bf16.mxu0 0
    %972 = vmatpush1.bf16.msra.mxu0 %v950
    %973 = vmatprep.subr.bf16.mxu0 0
    %974 = vmatpush1.bf16.msra.mxu0 %v951
    %975 = vmatprep.subr.bf16.mxu0 0
    %976 = vmatpush1.bf16.msra.mxu0 %v952
    %977 = vmatprep.subr.bf16.mxu0 0
    %978 = vmatpush1.bf16.msra.mxu0 0
    %979 = vmatprep.subr.bf16.mxu0 0
    %980 = vmatpush1.bf16.msra.mxu0 0
    %981 = vmatprep.subr.bf16.mxu0 0
    %982 = vmatpush1.bf16.msra.mxu0 0
    %983 = vmatprep.subr.bf16.mxu0 0
    %984 = vmatpush1.bf16.msra.mxu0 0
    %985 = vmatprep.subr.bf16.mxu0 0
    %986 = vmatpush1.bf16.msra.mxu0 0
    %987 = vmatprep.subr.bf16.mxu0 0
    %988 = vmatpush1.bf16.msra.mxu0 0
    %989 = vmatprep.subr.bf16.mxu0 0
    %990 = vmatpush1.bf16.msra.mxu0 0
    %991 = vmatprep.subr.bf16.mxu0 0
    %992 = vmatpush1.bf16.msra.mxu0 0
    %993 = vmatprep.mubr.bf16.mxu0 0
    %994 = vmatmul.mubr.bf16.gmra.mrb[0].mxu0 %v912
    %v995 = vpop.f32.mrb[0].mxu0
    %v996 = vadd.f32 0.0, %v995
    %v997 = vpop.f32.mrb[0].mxu0
    %v998 = vpop.f32.mrb[0].mxu0
    %v999 = vpop.f32.mrb[0].mxu0
    %1000 = vdwg.mxu0
    %v1001 = vadd.f32 %v911, %v996
    %v1002 = vtanh.pop %v1001
    %v1003 = vxor.u32 %v1001, 2147483648
    %v1004 = vmul.f32 %v1003, 1.442695
    %v1005 = vpow.pop %v1004
    %v1006 = vadd.f32 %v1005, 1.0
    %v1007 = vrcp.pop %v1006
    %v1008 = vmul.f32 1.0, %v1007
    %v1009 = vsel %vm260, %v1002, %v1008
    %1010 = vrot.lane.b32.xlu0 %v1009, 96
    %v1011 = vpop.permute.xlu0 %1010
    %1012 = vrot.lane.b32.xlu0 %v1009, 64
    %v1013 = vpop.permute.xlu0 %1012
    %1014 = vrot.lane.b32.xlu0 %v1009, 32
    %v1015 = vpop.permute.xlu0 %1014
    %v1016 = vmul.f32 %v1011, %v891
    %v1017 = vmul.f32 %v1009, %v1013
    %v1018 = vadd.f32 %v1016, %v1017
    %v1019 = vtanh.pop %v1018
    %v1020 = vmul.f32 %v1015, %v1019
    %1021 = vst [vmem:[#allocation3 + $0x28] sm:$0xff] %v1020
    %v1022 = vld [vmem:[#allocation9] sm:$0xf]
    %v1023 = vld [vmem:[#allocation9 + $0x4] sm:$0xf]
    %v1024 = vld [vmem:[#allocation9 + $0x8] sm:$0xf]
    %v1025 = vld [vmem:[#allocation9 + $0xc] sm:$0xf]
    %v1026 = vld [vmem:[#allocation9 + $0x10] sm:$0xf]
    %v1027 = vld [vmem:[#allocation9 + $0x14] sm:$0xf]
    %v1028 = vld [vmem:[#allocation9 + $0x18] sm:$0xf]
    %v1029 = vld [vmem:[#allocation9 + $0x1c] sm:$0xf]
    %v1030 = vld [vmem:[#allocation9 + $0x20] sm:$0xf]
    %v1031 = vld [vmem:[#allocation9 + $0x24] sm:$0xf]
    %v1032 = vld [vmem:[#allocation9 + $0x28] sm:$0xf]
    %v1033 = vld [vmem:[#allocation9 + $0x2c] sm:$0xf]
    %v1034 = vld [vmem:[#allocation9 + $0x30] sm:$0xf]
    %v1035 = vld [vmem:[#allocation9 + $0x34] sm:$0xf]
    %v1036 = vld [vmem:[#allocation9 + $0x38] sm:$0xf]
    %v1037 = vld [vmem:[#allocation9 + $0x3c] sm:$0xf]
    %v1038 = vld [vmem:[#allocation2 + $0x30] sm:$0xff]
    %v1039 = vpack.c.bf16 %v1020, %v1020
    %v1056 = vunpack.c.l.b16 %v1022
    %v1057 = vunpack.c.l.b16 %v1023
    %v1058 = vunpack.c.l.b16 %v1024
    %v1059 = vunpack.c.l.b16 %v1025
    %v1060 = vunpack.c.l.b16 %v1026
    %v1061 = vunpack.c.l.b16 %v1027
    %v1062 = vunpack.c.l.b16 %v1028
    %v1063 = vunpack.c.l.b16 %v1029
    %v1064 = vunpack.c.l.b16 %v1030
    %v1065 = vunpack.c.l.b16 %v1031
    %v1066 = vunpack.c.l.b16 %v1032
    %v1067 = vunpack.c.l.b16 %v1033
    %v1068 = vunpack.c.l.b16 %v1034
    %v1069 = vunpack.c.l.b16 %v1035
    %v1070 = vunpack.c.l.b16 %v1036
    %v1071 = vunpack.c.l.b16 %v1037
    %v1072 = vpack.c.b16 %v1057, %v1056
    %v1073 = vpack.c.b16 %v1059, %v1058
    %v1074 = vpack.c.b16 %v1061, %v1060
    %v1075 = vpack.c.b16 %v1063, %v1062
    %v1076 = vpack.c.b16 %v1065, %v1064
    %v1077 = vpack.c.b16 %v1067, %v1066
    %v1078 = vpack.c.b16 %v1069, %v1068
    %v1079 = vpack.c.b16 %v1071, %v1070
    %1088 = vmatprep.subr.bf16.mxu0 0
    %1089 = vmatpush1.bf16.msra.mxu0 %v1072
    %1090 = vmatprep.subr.bf16.mxu0 0
    %1091 = vmatpush1.bf16.msra.mxu0 %v1073
    %1092 = vmatprep.subr.bf16.mxu0 0
    %1093 = vmatpush1.bf16.msra.mxu0 %v1074
    %1094 = vmatprep.subr.bf16.mxu0 0
    %1095 = vmatpush1.bf16.msra.mxu0 %v1075
    %1096 = vmatprep.subr.bf16.mxu0 0
    %1097 = vmatpush1.bf16.msra.mxu0 %v1076
    %1098 = vmatprep.subr.bf16.mxu0 0
    %1099 = vmatpush1.bf16.msra.mxu0 %v1077
    %1100 = vmatprep.subr.bf16.mxu0 0
    %1101 = vmatpush1.bf16.msra.mxu0 %v1078
    %1102 = vmatprep.subr.bf16.mxu0 0
    %1103 = vmatpush1.bf16.msra.mxu0 %v1079
    %1104 = vmatprep.subr.bf16.mxu0 0
    %1105 = vmatpush1.bf16.msra.mxu0 0
    %1106 = vmatprep.subr.bf16.mxu0 0
    %1107 = vmatpush1.bf16.msra.mxu0 0
    %1108 = vmatprep.subr.bf16.mxu0 0
    %1109 = vmatpush1.bf16.msra.mxu0 0
    %1110 = vmatprep.subr.bf16.mxu0 0
    %1111 = vmatpush1.bf16.msra.mxu0 0
    %1112 = vmatprep.subr.bf16.mxu0 0
    %1113 = vmatpush1.bf16.msra.mxu0 0
    %1114 = vmatprep.subr.bf16.mxu0 0
    %1115 = vmatpush1.bf16.msra.mxu0 0
    %1116 = vmatprep.subr.bf16.mxu0 0
    %1117 = vmatpush1.bf16.msra.mxu0 0
    %1118 = vmatprep.subr.bf16.mxu0 0
    %1119 = vmatpush1.bf16.msra.mxu0 0
    %1120 = vmatprep.mubr.bf16.mxu0 0
    %1121 = vmatmul.mubr.bf16.gmra.mrb[0].mxu0 %v1039
    %v1122 = vpop.f32.mrb[0].mxu0
    %v1123 = vadd.f32 0.0, %v1122
    %v1124 = vpop.f32.mrb[0].mxu0
    %v1125 = vpop.f32.mrb[0].mxu0
    %v1126 = vpop.f32.mrb[0].mxu0
    %1127 = vdwg.mxu0
    %v1128 = vadd.f32 %v1038, %v1123
    %v1129 = vtanh.pop %v1128
    %v1130 = vxor.u32 %v1128, 2147483648
    %v1131 = vmul.f32 %v1130, 1.442695
    %v1132 = vpow.pop %v1131
    %v1133 = vadd.f32 %v1132, 1.0
    %v1134 = vrcp.pop %v1133
    %v1135 = vmul.f32 1.0, %v1134
    %v1136 = vsel %vm260, %v1129, %v1135
    %1137 = vrot.lane.b32.xlu0 %v1136, 96
    %v1138 = vpop.permute.xlu0 %1137
    %1139 = vrot.lane.b32.xlu0 %v1136, 64
    %v1140 = vpop.permute.xlu0 %1139
    %1141 = vrot.lane.b32.xlu0 %v1136, 32
    %v1142 = vpop.permute.xlu0 %1141
    %v1143 = vmul.f32 %v1138, %v1018
    %v1144 = vmul.f32 %v1136, %v1140
    %v1145 = vadd.f32 %v1143, %v1144
    %v1146 = vtanh.pop %v1145
    %v1147 = vmul.f32 %v1142, %v1146
    %1148 = vst [vmem:[#allocation3 + $0x30] sm:$0xff] %v1147
    %v1149 = vld [vmem:[#allocation9] sm:$0xf]
    %v1150 = vld [vmem:[#allocation9 + $0x4] sm:$0xf]
    %v1151 = vld [vmem:[#allocation9 + $0x8] sm:$0xf]
    %v1152 = vld [vmem:[#allocation9 + $0xc] sm:$0xf]
    %v1153 = vld [vmem:[#allocation9 + $0x10] sm:$0xf]
    %v1154 = vld [vmem:[#allocation9 + $0x14] sm:$0xf]
    %v1155 = vld [vmem:[#allocation9 + $0x18] sm:$0xf]
    %v1156 = vld [vmem:[#allocation9 + $0x1c] sm:$0xf]
    %v1157 = vld [vmem:[#allocation9 + $0x20] sm:$0xf]
    %v1158 = vld [vmem:[#allocation9 + $0x24] sm:$0xf]
    %v1159 = vld [vmem:[#allocation9 + $0x28] sm:$0xf]
    %v1160 = vld [vmem:[#allocation9 + $0x2c] sm:$0xf]
    %v1161 = vld [vmem:[#allocation9 + $0x30] sm:$0xf]
    %v1162 = vld [vmem:[#allocation9 + $0x34] sm:$0xf]
    %v1163 = vld [vmem:[#allocation9 + $0x38] sm:$0xf]
    %v1164 = vld [vmem:[#allocation9 + $0x3c] sm:$0xf]
    %v1165 = vld [vmem:[#allocation2 + $0x38] sm:$0xff]
    %v1166 = vpack.c.bf16 %v1147, %v1147
    %v1183 = vunpack.c.l.b16 %v1149
    %v1184 = vunpack.c.l.b16 %v1150
    %v1185 = vunpack.c.l.b16 %v1151
    %v1186 = vunpack.c.l.b16 %v1152
    %v1187 = vunpack.c.l.b16 %v1153
    %v1188 = vunpack.c.l.b16 %v1154
    %v1189 = vunpack.c.l.b16 %v1155
    %v1190 = vunpack.c.l.b16 %v1156
    %v1191 = vunpack.c.l.b16 %v1157
    %v1192 = vunpack.c.l.b16 %v1158
    %v1193 = vunpack.c.l.b16 %v1159
    %v1194 = vunpack.c.l.b16 %v1160
    %v1195 = vunpack.c.l.b16 %v1161
    %v1196 = vunpack.c.l.b16 %v1162
    %v1197 = vunpack.c.l.b16 %v1163
    %v1198 = vunpack.c.l.b16 %v1164
    %v1199 = vpack.c.b16 %v1184, %v1183
    %v1200 = vpack.c.b16 %v1186, %v1185
    %v1201 = vpack.c.b16 %v1188, %v1187
    %v1202 = vpack.c.b16 %v1190, %v1189
    %v1203 = vpack.c.b16 %v1192, %v1191
    %v1204 = vpack.c.b16 %v1194, %v1193
    %v1205 = vpack.c.b16 %v1196, %v1195
    %v1206 = vpack.c.b16 %v1198, %v1197
    %1215 = vmatprep.subr.bf16.mxu0 0
    %1216 = vmatpush1.bf16.msra.mxu0 %v1199
    %1217 = vmatprep.subr.bf16.mxu0 0
    %1218 = vmatpush1.bf16.msra.mxu0 %v1200
    %1219 = vmatprep.subr.bf16.mxu0 0
    %1220 = vmatpush1.bf16.msra.mxu0 %v1201
    %1221 = vmatprep.subr.bf16.mxu0 0
    %1222 = vmatpush1.bf16.msra.mxu0 %v1202
    %1223 = vmatprep.subr.bf16.mxu0 0
    %1224 = vmatpush1.bf16.msra.mxu0 %v1203
    %1225 = vmatprep.subr.bf16.mxu0 0
    %1226 = vmatpush1.bf16.msra.mxu0 %v1204
    %1227 = vmatprep.subr.bf16.mxu0 0
    %1228 = vmatpush1.bf16.msra.mxu0 %v1205
    %1229 = vmatprep.subr.bf16.mxu0 0
    %1230 = vmatpush1.bf16.msra.mxu0 %v1206
    %1231 = vmatprep.subr.bf16.mxu0 0
    %1232 = vmatpush1.bf16.msra.mxu0 0
    %1233 = vmatprep.subr.bf16.mxu0 0
    %1234 = vmatpush1.bf16.msra.mxu0 0
    %1235 = vmatprep.subr.bf16.mxu0 0
    %1236 = vmatpush1.bf16.msra.mxu0 0
    %1237 = vmatprep.subr.bf16.mxu0 0
    %1238 = vmatpush1.bf16.msra.mxu0 0
    %1239 = vmatprep.subr.bf16.mxu0 0
    %1240 = vmatpush1.bf16.msra.mxu0 0
    %1241 = vmatprep.subr.bf16.mxu0 0
    %1242 = vmatpush1.bf16.msra.mxu0 0
    %1243 = vmatprep.subr.bf16.mxu0 0
    %1244 = vmatpush1.bf16.msra.mxu0 0
    %1245 = vmatprep.subr.bf16.mxu0 0
    %1246 = vmatpush1.bf16.msra.mxu0 0
    %1247 = vmatprep.mubr.bf16.mxu0 0
    %1248 = vmatmul.mubr.bf16.gmra.mrb[0].mxu0 %v1166
    %v1249 = vpop.f32.mrb[0].mxu0
    %v1250 = vadd.f32 0.0, %v1249
    %v1251 = vpop.f32.mrb[0].mxu0
    %v1252 = vpop.f32.mrb[0].mxu0
    %v1253 = vpop.f32.mrb[0].mxu0
    %1254 = vdwg.mxu0
    %v1255 = vadd.f32 %v1165, %v1250
    %v1256 = vtanh.pop %v1255
    %v1257 = vxor.u32 %v1255, 2147483648
    %v1258 = vmul.f32 %v1257, 1.442695
    %v1259 = vpow.pop %v1258
    %v1260 = vadd.f32 %v1259, 1.0
    %v1261 = vrcp.pop %v1260
    %v1262 = vmul.f32 1.0, %v1261
    %v1263 = vsel %vm260, %v1256, %v1262
    %1264 = vrot.lane.b32.xlu0 %v1263, 96
    %v1265 = vpop.permute.xlu0 %1264
    %1266 = vrot.lane.b32.xlu0 %v1263, 64
    %v1267 = vpop.permute.xlu0 %1266
    %1268 = vrot.lane.b32.xlu0 %v1263, 32
    %v1269 = vpop.permute.xlu0 %1268
    %v1270 = vmul.f32 %v1265, %v1145
    %v1271 = vmul.f32 %v1263, %v1267
    %v1272 = vadd.f32 %v1270, %v1271
    %v1273 = vtanh.pop %v1272
    %v1274 = vmul.f32 %v1269, %v1273
    %1275 = vst [vmem:[#allocation3 + $0x38] sm:$0xff] %v1274
    %v1276 = vld [vmem:[#allocation3] sm:$0xff]
    %v1277 = vld [vmem:[#allocation3 + $0x8] sm:$0xff]
    %v1278 = vld [vmem:[#allocation3 + $0x10] sm:$0xff]
    %v1279 = vld [vmem:[#allocation3 + $0x18] sm:$0xff]
    %v1280 = vld [vmem:[#allocation3 + $0x20] sm:$0xff]
    %v1281 = vld [vmem:[#allocation3 + $0x28] sm:$0xff]
    %v1282 = vld [vmem:[#allocation3 + $0x30] sm:$0xff]
    %v1283 = vld [vmem:[#allocation3 + $0x38] sm:$0xff]
    %v1284 = vpack.c.bf16 %v1277, %v1276
    %v1285 = vpack.c.bf16 %v1279, %v1278
    %v1286 = vpack.c.bf16 %v1281, %v1280
    %v1287 = vpack.c.bf16 %v1283, %v1282
    %v1288 = vld [vmem:[#allocation10] sm:$0xf]
    %v1289 = vld [vmem:[#allocation10 + $0x4] sm:$0xf]
    %v1290 = vld [vmem:[#allocation10 + $0x8] sm:$0xf]
    %v1291 = vld [vmem:[#allocation10 + $0xc] sm:$0xf]
    %v1292 = vld [vmem:[#allocation10 + $0x10] sm:$0xf]
    %v1293 = vld [vmem:[#allocation10 + $0x14] sm:$0xf]
    %v1294 = vld [vmem:[#allocation10 + $0x18] sm:$0xf]
    %v1295 = vld [vmem:[#allocation10 + $0x1c] sm:$0xf]
    %v1296 = vld [vmem:[#allocation10 + $0x20] sm:$0xf]
    %v1297 = vld [vmem:[#allocation10 + $0x24] sm:$0xf]
    %v1298 = vld [vmem:[#allocation10 + $0x28] sm:$0xf]
    %v1299 = vld [vmem:[#allocation10 + $0x2c] sm:$0xf]
    %v1300 = vld [vmem:[#allocation10 + $0x30] sm:$0xf]
    %v1301 = vld [vmem:[#allocation10 + $0x34] sm:$0xf]
    %v1302 = vld [vmem:[#allocation10 + $0x38] sm:$0xf]
    %v1303 = vld [vmem:[#allocation10 + $0x3c] sm:$0xf]
    %v1304 = vld [vmem:[%s5] sm:$0x1]
    %v1306 = vlaneseq
    %v1307 = vshrl.u32 %v1306, 7
    %v1308 = vsub.s32 0, %v1307
    %v1309 = vrot.slane %v1304, %v1308
    %v1327 = vunpack.c.l.b16 %v1288
    %v1328 = vunpack.c.l.b16 %v1289
    %v1329 = vunpack.c.l.b16 %v1290
    %v1330 = vunpack.c.l.b16 %v1291
    %v1331 = vunpack.c.l.b16 %v1292
    %v1332 = vunpack.c.l.b16 %v1293
    %v1333 = vunpack.c.l.b16 %v1294
    %v1334 = vunpack.c.l.b16 %v1295
    %v1335 = vunpack.c.l.b16 %v1296
    %v1336 = vunpack.c.l.b16 %v1297
    %v1337 = vunpack.c.l.b16 %v1298
    %v1338 = vunpack.c.l.b16 %v1299
    %v1339 = vunpack.c.l.b16 %v1300
    %v1340 = vunpack.c.l.b16 %v1301
    %v1341 = vunpack.c.l.b16 %v1302
    %v1342 = vunpack.c.l.b16 %v1303
    %v1343 = vpack.c.b16 %v1328, %v1327
    %v1344 = vpack.c.b16 %v1330, %v1329
    %v1345 = vpack.c.b16 %v1332, %v1331
    %v1346 = vpack.c.b16 %v1334, %v1333
    %v1347 = vpack.c.b16 %v1336, %v1335
    %v1348 = vpack.c.b16 %v1338, %v1337
    %v1349 = vpack.c.b16 %v1340, %v1339
    %v1350 = vpack.c.b16 %v1342, %v1341
    %1359 = vmatprep.subr.bf16.mxu0 0
    %1360 = vmatpush1.bf16.msra.mxu0 %v1343
    %1361 = vmatprep.subr.bf16.mxu0 0
    %1362 = vmatpush1.bf16.msra.mxu0 %v1344
    %1363 = vmatprep.subr.bf16.mxu0 0
    %1364 = vmatpush1.bf16.msra.mxu0 %v1345
    %1365 = vmatprep.subr.bf16.mxu0 0
    %1366 = vmatpush1.bf16.msra.mxu0 %v1346
    %1367 = vmatprep.subr.bf16.mxu0 0
    %1368 = vmatpush1.bf16.msra.mxu0 %v1347
    %1369 = vmatprep.subr.bf16.mxu0 0
    %1370 = vmatpush1.bf16.msra.mxu0 %v1348
    %1371 = vmatprep.subr.bf16.mxu0 0
    %1372 = vmatpush1.bf16.msra.mxu0 %v1349
    %1373 = vmatprep.subr.bf16.mxu0 0
    %1374 = vmatpush1.bf16.msra.mxu0 %v1350
    %1375 = vmatprep.subr.bf16.mxu0 0
    %1376 = vmatpush1.bf16.msra.mxu0 0
    %1377 = vmatprep.subr.bf16.mxu0 0
    %1378 = vmatpush1.bf16.msra.mxu0 0
    %1379 = vmatprep.subr.bf16.mxu0 0
    %1380 = vmatpush1.bf16.msra.mxu0 0
    %1381 = vmatprep.subr.bf16.mxu0 0
    %1382 = vmatpush1.bf16.msra.mxu0 0
    %1383 = vmatprep.subr.bf16.mxu0 0
    %1384 = vmatpush1.bf16.msra.mxu0 0
    %1385 = vmatprep.subr.bf16.mxu0 0
    %1386 = vmatpush1.bf16.msra.mxu0 0
    %1387 = vmatprep.subr.bf16.mxu0 0
    %1388 = vmatpush1.bf16.msra.mxu0 0
    %1389 = vmatprep.subr.bf16.mxu0 0
    %1390 = vmatpush1.bf16.msra.mxu0 0
    %1391 = vmatprep.mubr.bf16.mxu0 0
    %1392 = vmatmul.mubr.bf16.gmra.mrb[0].mxu0 %v1284
    %v1393 = vpop.f32.mrb[0].mxu0
    %v1394 = vadd.f32 %v1309, %v1393
    %v1395 = vpop.f32.mrb[0].mxu0
    %v1396 = vpop.f32.mrb[0].mxu0
    %v1397 = vadd.f32 %v1309, %v1396
    %v1398 = vpop.f32.mrb[0].mxu0
    %1399 = vmatprep.mubr.bf16.mxu0 0
    %1400 = vmatmul.mubr.bf16.gmra.mrb[0].mxu0 %v1285
    %v1401 = vpop.f32.mrb[0].mxu0
    %v1402 = vadd.f32 %v1309, %v1401
    %v1403 = vpop.f32.mrb[0].mxu0
    %v1404 = vpop.f32.mrb[0].mxu0
    %v1405 = vadd.f32 %v1309, %v1404
    %v1406 = vpop.f32.mrb[0].mxu0
    %1407 = vmatprep.mubr.bf16.mxu0 0
    %1408 = vmatmul.mubr.bf16.gmra.mrb[0].mxu0 %v1286
    %v1409 = vpop.f32.mrb[0].mxu0
    %v1410 = vadd.f32 %v1309, %v1409
    %v1411 = vpop.f32.mrb[0].mxu0
    %v1412 = vpop.f32.mrb[0].mxu0
    %v1413 = vadd.f32 %v1309, %v1412
    %v1414 = vpop.f32.mrb[0].mxu0
    %1415 = vmatprep.mubr.bf16.mxu0 0
    %1416 = vmatmul.mubr.bf16.gmra.mrb[0].mxu0 %v1287
    %v1417 = vpop.f32.mrb[0].mxu0
    %v1418 = vadd.f32 %v1309, %v1417
    %v1419 = vpop.f32.mrb[0].mxu0
    %v1420 = vpop.f32.mrb[0].mxu0
    %v1421 = vadd.f32 %v1309, %v1420
    %v1422 = vpop.f32.mrb[0].mxu0
    %1423 = vdwg.mxu0
    %1424 = vst [vmem:[#allocation12] sm:$0xff] %v1394
    %1425 = vst [vmem:[#allocation12 + $0x8] sm:$0xff] %v1397
    %1426 = vst [vmem:[#allocation12 + $0x10] sm:$0xff] %v1402
    %1427 = vst [vmem:[#allocation12 + $0x18] sm:$0xff] %v1405
    %1428 = vst [vmem:[#allocation12 + $0x20] sm:$0xff] %v1410
    %1429 = vst [vmem:[#allocation12 + $0x28] sm:$0xff] %v1413
    %1430 = vst [vmem:[#allocation12 + $0x30] sm:$0xff] %v1418
    %1431 = vst [vmem:[#allocation12 + $0x38] sm:$0xff] %v1421
    // Predicated region
    $region42: #{tpu_custom_call.1} parent=1 // pred_check
      _
    $region43: #{tpu_custom_call.1} parent=1 // pred_check_branch
      %1433 = sbr.rel (0) target = $region45
    $region44: #{tpu_custom_call.1} parent=1 // pred_region
      %s1435 = ssub.s32 1024, 1024
      %1436 = vsyncadd [#allocation6], %s1435
      %s1437 = sshll.u32 [#allocation12], 4
      %s1438 = int_to_ptr.vmem [resolvable:$true] %s1437
      %1443 = dma.vmem_to_hbm [thread:$0]  %s1438, 1024, %s6, [#allocation6], 128, 128, 8
    $region45: #{tpu_custom_call.1} parent=1 // pred_fallthru
      _
    // Predicated region
    $region46: #{tpu_custom_call.1} parent=1 // pred_check
      _
    $region47: #{tpu_custom_call.1} parent=1 // pred_check_branch
      %1445 = sbr.rel (0) target = $region49
    $region48: #{tpu_custom_call.1} parent=1 // pred_region
      %1446 = dma.done [#allocation6], 1024
    $region49: #{tpu_custom_call.1} parent=1 // pred_fallthru
      _
    %1447 = vsyncpa [#allocation5], 1
    %1448 = vsyncpa [#allocation8], 1
    %1449 = vsyncpa [#allocation11], 1
    %1450 = vsyncpa [#allocation6], 1

</llo_original>
